<compile_context>
chip_gen: v7x
topology: tpu7x:2x2x1
jax: 0.10.0
libtpu: 0.0.40
codegen_flags: <defaults>
</compile_context>

<pallas_src>
import jax
import jax.numpy as jnp
import numpy as np
from jax.experimental import pallas as pl
from jax.experimental.pallas import tpu as pltpu


# --------------------------- fused GRU + FC kernel ---------------------------
def make_gru_fused_kernel(num_layers, batch, seq_len, hidden, matmul_bf16):
    """Fused kernel: in-kernel embedding gather + `num_layers` GRU + Linear.

    Positional refs:
      ids_ref                    (S*B, 1)  int32   time-major token ids
      emb_ref                    (Vp, E)           embedding table (row-padded)
      per layer l (4 refs):
        wih_ref  (in_l, Wp)      input->gates weights (transposed, packed gates)
        whh_ref  (H,    Wp)      hidden->gates weights (transposed, packed gates)
        bpre_ref (1,    Wp)      b_ih + [b_hr, b_hz, 0]  (hoisted-projection bias)
        bhn_ref  (1,    H)       b_hn                    (n-gate recurrent bias)
      fcw_ref                    (H, O)
      fcb_ref                    (1, O)
      o_ref                      (B, O)            output
    """
    mm_dtype = jnp.bfloat16 if matmul_bf16 else jnp.float32

    def kernel(*refs):
        ids_ref, emb_ref = refs[0], refs[1]
        layer_refs = refs[2:2 + 4 * num_layers]
        fcw_ref, fcb_ref, o_ref = refs[2 + 4 * num_layers:]

        B, S, H = batch, seq_len, hidden
        SB = S * B
        Vp = emb_ref.shape[0]

        # ---- embedding gather as a one-hot matmul on the MXU (exact) ----
        ids = ids_ref[...]                                          # (S*B, 1) i32
        vocab_iota = jax.lax.broadcasted_iota(jnp.int32, (SB, Vp), 1)
        onehot = (vocab_iota == ids).astype(jnp.float32)            # (S*B, Vp)
        x = jnp.dot(onehot, emb_ref[...],
                    preferred_element_type=jnp.float32)             # (S*B, E)
        # dropout(0.5): eval-mode identity

        h = jnp.zeros((B, H), jnp.float32)
        for l in range(num_layers):
            wih_ref, whh_ref, bpre_ref, bhn_ref = layer_refs[4 * l:4 * l + 4]
            whh = whh_ref[...].astype(mm_dtype)      # loop-invariant MXU RHS
            bhn = bhn_ref[...]                       # (1, H)

            # Hoisted input projection: one batched matmul off the serial h
            # chain, b_ih (+ b_hr, b_hz) folded into the bias.
            gi_all = (jnp.dot(x.astype(mm_dtype), wih_ref[...].astype(mm_dtype),
                              preferred_element_type=jnp.float32)
                      + bpre_ref[...])                               # (S*B, Wp)

            h = jnp.zeros((B, H), jnp.float32)
            hs = []
            # Statically unrolled recurrence; only h @ W_hh stays on the serial
            # chain and its output is a single 128-wide MXU tile.
            for t in range(S):
                gi = gi_all[t * B:(t + 1) * B, :]                    # (B, Wp)
                gh = jnp.dot(h.astype(mm_dtype), whh,
                             preferred_element_type=jnp.float32)     # (B, Wp)
                rz = jax.nn.sigmoid(gi[:, :2 * H] + gh[:, :2 * H])
                r, z = rz[:, :H], rz[:, H:]
                n = jnp.tanh(gi[:, 2 * H:3 * H] + r * (gh[:, 2 * H:3 * H] + bhn))
                h = (1.0 - z) * n + z * h
                hs.append(h)
            if l < num_layers - 1:
                x = jnp.concatenate(hs, axis=0)                      # (S*B, H)

        # Final Linear on the last-timestep hidden of the top layer (fused).
        o_ref[...] = (jnp.dot(h, fcw_ref[...],
                              preferred_element_type=jnp.float32)
                      + fcb_ref[...])

    return kernel


# --------------------------- param packing (wrapper) --------------------------
def prepare_kernel_params(params):
    """Pack/fold torch-layout params into the kernel layout (done once)."""
    H = params["gru_layers"][0]["whh_t"].shape[0]
    W = 3 * H
    Wp = ((W + 127) // 128) * 128          # packed gates, one 128-lane tile
    flat = []
    for layer in params["gru_layers"]:
        wih, whh = layer["wih_t"], layer["whh_t"]
        b_ih, b_hh = layer["b_ih"], layer["b_hh"]
        wih_p = jnp.pad(wih, ((0, 0), (0, Wp - W)))
        whh_p = jnp.pad(whh, ((0, 0), (0, Wp - W)))
        # Fold b_ih + b_h{r,z} into the hoisted bias; keep b_hn for the n gate
        # (torch: n = tanh(g_in + r * (g_hn + b_hn))).
        b_pre = b_ih + jnp.concatenate(
            [b_hh[:, :2 * H], jnp.zeros((1, H), b_hh.dtype)], axis=-1)
        b_pre_p = jnp.pad(b_pre, ((0, 0), (0, Wp - W)))
        b_hn = b_hh[:, 2 * H:]
        flat += [wih_p, whh_p, b_pre_p, b_hn]
    return flat, params["fc_w_t"], params["fc_b"].reshape(1, -1)


# ------------------------------ full forward ---------------------------------
def gru_model_forward(token_ids, params, *, matmul_bf16=False):
    """token_ids: (B, S) int32 -> (B, out_dim) float32."""
    B, S = token_ids.shape
    H = params["gru_layers"][0]["whh_t"].shape[0]
    num_layers = len(params["gru_layers"])
    flat, fc_w, fc_b = prepare_kernel_params(params)
    out_dim = fc_w.shape[1]

    # Embedding table: pad vocab rows to a sublane multiple (ids < V, so the
    # extra zero rows never get selected by the one-hot -> exact).
    emb = params["embedding"].astype(jnp.float32)
    V, E = emb.shape
    Vp = ((V + 7) // 8) * 8
    emb_p = jnp.pad(emb, ((0, Vp - V), (0, 0)))

    # Time-major token ids (row = t*B + b) so per-step gi slices and the
    # inter-layer sequence are contiguous sublanes.
    ids_tm = jnp.transpose(token_ids).reshape(S * B, 1).astype(jnp.int32)

    kernel = make_gru_fused_kernel(num_layers, B, S, H, matmul_bf16)
    n_inputs = 2 + 4 * num_layers + 2
    vmem = pl.BlockSpec(memory_space=pltpu.MemorySpace.VMEM)
    return pl.pallas_call(
        kernel,
        out_shape=jax.ShapeDtypeStruct((B, out_dim), jnp.float32),
        in_specs=[vmem] * n_inputs,
        out_specs=vmem,
    )(ids_tm, emb_p, *flat, fc_w, fc_b)


# ------------------------------ pure-JAX reference ----------------------------
def gru_model_ref(token_ids, params):
    emb = jnp.take(params["embedding"], token_ids, axis=0)
    x = jnp.transpose(emb, (1, 0, 2)).astype(jnp.float32)     # (S, B, E)
    for layer in params["gru_layers"]:
        S, B, _ = x.shape
        H = layer["whh_t"].shape[0]
        h = jnp.zeros((B, H), jnp.float32)
        outs = []
        for t in range(S):
            gi = x[t] @ layer["wih_t"] + layer["b_ih"]
            gh = h @ layer["whh_t"] + layer["b_hh"]
            r = jax.nn.sigmoid(gi[:, 0:H] + gh[:, 0:H])
            z = jax.nn.sigmoid(gi[:, H:2 * H] + gh[:, H:2 * H])
            n = jnp.tanh(gi[:, 2 * H:3 * H] + r * gh[:, 2 * H:3 * H])
            h = (1.0 - z) * n + z * h
            outs.append(h)
        x = jnp.stack(outs, axis=0)
    return x[-1] @ params["fc_w_t"] + params["fc_b"].reshape(1, -1)


# --------------------------------- params -------------------------------------
def init_params(key, vocab, em_dim, hidden_dim, num_layers, out_dim):
    keys = jax.random.split(key, 3 + 6 * num_layers)
    k = 1.0 / np.sqrt(hidden_dim)
    params = {"embedding": jax.random.normal(keys[0], (vocab, em_dim), jnp.float32)}
    layers = []
    ki = 1
    for l in range(num_layers):
        in_dim = em_dim if l == 0 else hidden_dim
        layers.append({
            # stored transposed vs torch: (in, 3H) / (H, 3H), gate order [r,z,n]
            "wih_t": jax.random.uniform(keys[ki + 0], (in_dim, 3 * hidden_dim),
                                        jnp.float32, -k, k),
            "whh_t": jax.random.uniform(keys[ki + 1], (hidden_dim, 3 * hidden_dim),
                                        jnp.float32, -k, k),
            "b_ih": jax.random.uniform(keys[ki + 2], (1, 3 * hidden_dim),
                                       jnp.float32, -k, k),
            "b_hh": jax.random.uniform(keys[ki + 3], (1, 3 * hidden_dim),
                                       jnp.float32, -k, k),
        })
        ki += 4
    params["gru_layers"] = layers
    params["fc_w_t"] = jax.random.uniform(keys[ki], (hidden_dim, out_dim),
                                          jnp.float32, -k, k)
    params["fc_b"] = jax.random.uniform(keys[ki + 1], (out_dim,),
                                        jnp.float32, -k, k)
    return params


if __name__ == "__main__":
    VOCAB, EM_DIM, HIDDEN, NUM_LAYERS, OUT_DIM = 50, 32, 32, 2, 4
    B, S = 2, 8

    key = jax.random.PRNGKey(0)
    k_param, k_tok = jax.random.split(key)
    params = init_params(k_param, VOCAB, EM_DIM, HIDDEN, NUM_LAYERS, OUT_DIM)
    token_ids = jax.random.randint(k_tok, (B, S), 0, VOCAB, dtype=jnp.int32)

    ref = jax.block_until_ready(gru_model_ref(token_ids, params))

    # Exact-parity path (f32 MXU operands).
    out = jax.block_until_ready(gru_model_forward(token_ids, params))
    assert out.shape == (B, OUT_DIM)
    np.testing.assert_allclose(np.asarray(out), np.asarray(ref),
                               rtol=1e-5, atol=1e-5)

    # bf16-MXU fast path (review item): bf16 operand rounding expected, so only
    # a loose sanity check against the f32 reference.
    out_bf16 = jax.block_until_ready(
        gru_model_forward(token_ids, params, matmul_bf16=True))
    np.testing.assert_allclose(np.asarray(out_bf16), np.asarray(ref),
                               rtol=1e-1, atol=1e-1)

    print("KERNEL_OK")
</pallas_src>

<mosaic_0001>
module attributes {stable_mosaic.version = 11 : i64} {
  func.func @kernel(%arg0: memref<16x1xi32, #tpu.memory_space<vmem>>, %arg1: memref<56x32xf32, #tpu.memory_space<vmem>>, %arg2: memref<32x128xf32, #tpu.memory_space<vmem>>, %arg3: memref<32x128xf32, #tpu.memory_space<vmem>>, %arg4: memref<1x128xf32, #tpu.memory_space<vmem>>, %arg5: memref<1x32xf32, #tpu.memory_space<vmem>>, %arg6: memref<32x128xf32, #tpu.memory_space<vmem>>, %arg7: memref<32x128xf32, #tpu.memory_space<vmem>>, %arg8: memref<1x128xf32, #tpu.memory_space<vmem>>, %arg9: memref<1x32xf32, #tpu.memory_space<vmem>>, %arg10: memref<32x4xf32, #tpu.memory_space<vmem>>, %arg11: memref<1x4xf32, #tpu.memory_space<vmem>>, %arg12: memref<2x4xf32, #tpu.memory_space<vmem>>) attributes {dimension_semantics = [], scalar_prefetch = 0 : i64, scratch_operands = 0 : i64, tpu.core_type = #tpu.core_type<tc>} {
    %c0 = arith.constant 0 : index
    %c0_0 = arith.constant 0 : index
    %0 = vector.load %arg0[%c0, %c0_0] : memref<16x1xi32, #tpu.memory_space<vmem>>, vector<16x1xi32>
    %1 = tpu.iota {dimensions = array<i32: 1>} : vector<16x56xi32>
    %2 = vector.broadcast %0 : vector<16x1xi32> to vector<16x56xi32>
    %3 = arith.cmpi eq, %1, %2 : vector<16x56xi32>
    %4 = arith.extui %3 : vector<16x56xi1> to vector<16x56xi32>
    %5 = arith.sitofp %4 : vector<16x56xi32> to vector<16x56xf32>
    %c0_1 = arith.constant 0 : index
    %c0_2 = arith.constant 0 : index
    %6 = vector.load %arg1[%c0_1, %c0_2] : memref<56x32xf32, #tpu.memory_space<vmem>>, vector<56x32xf32>
    %cst = arith.constant dense<0.000000e+00> : vector<16x32xf32>
    %7 = tpu.matmul %5, %6, %cst {dimension_numbers = #tpu.dot_dimension_numbers<[1], [0], [0], [1], [0, 0, 1, 1], [], []>} : vector<16x56xf32>, vector<56x32xf32>, vector<16x32xf32> -> vector<16x32xf32>
    %c0_3 = arith.constant 0 : index
    %c0_4 = arith.constant 0 : index
    %8 = vector.load %arg3[%c0_3, %c0_4] : memref<32x128xf32, #tpu.memory_space<vmem>>, vector<32x128xf32>
    %c0_5 = arith.constant 0 : index
    %c0_6 = arith.constant 0 : index
    %9 = vector.load %arg5[%c0_5, %c0_6] : memref<1x32xf32, #tpu.memory_space<vmem>>, vector<1x32xf32>
    %c0_7 = arith.constant 0 : index
    %c0_8 = arith.constant 0 : index
    %10 = vector.load %arg2[%c0_7, %c0_8] : memref<32x128xf32, #tpu.memory_space<vmem>>, vector<32x128xf32>
    %cst_9 = arith.constant dense<0.000000e+00> : vector<16x128xf32>
    %11 = tpu.matmul %7, %10, %cst_9 {dimension_numbers = #tpu.dot_dimension_numbers<[1], [0], [0], [1], [0, 0, 1, 1], [], []>} : vector<16x32xf32>, vector<32x128xf32>, vector<16x128xf32> -> vector<16x128xf32>
    %c0_10 = arith.constant 0 : index
    %c0_11 = arith.constant 0 : index
    %12 = vector.load %arg4[%c0_10, %c0_11] : memref<1x128xf32, #tpu.memory_space<vmem>>, vector<1x128xf32>
    %13 = vector.broadcast %12 : vector<1x128xf32> to vector<16x128xf32>
    %14 = arith.addf %11, %13 : vector<16x128xf32>
    %cst_12 = arith.constant 0.000000e+00 : f32
    %15 = vector.broadcast %cst_12 : f32 to vector<2x32xf32>
    %16 = vector.extract_strided_slice %14 {offsets = [0, 0], sizes = [2, 128], strides = [1, 1]} : vector<16x128xf32> to vector<2x128xf32>
    %cst_13 = arith.constant dense<0.000000e+00> : vector<2x128xf32>
    %17 = tpu.matmul %15, %8, %cst_13 {dimension_numbers = #tpu.dot_dimension_numbers<[1], [0], [0], [1], [0, 0, 1, 1], [], []>} : vector<2x32xf32>, vector<32x128xf32>, vector<2x128xf32> -> vector<2x128xf32>
    %18 = vector.extract_strided_slice %16 {offsets = [0, 0], sizes = [2, 64], strides = [1, 1]} : vector<2x128xf32> to vector<2x64xf32>
    %19 = vector.extract_strided_slice %17 {offsets = [0, 0], sizes = [2, 64], strides = [1, 1]} : vector<2x128xf32> to vector<2x64xf32>
    %20 = arith.addf %18, %19 : vector<2x64xf32>
    %21 = arith.negf %20 : vector<2x64xf32>
    %22 = math.exp %21 : vector<2x64xf32>
    %cst_14 = arith.constant 1.000000e+00 : f32
    %23 = vector.broadcast %cst_14 : f32 to vector<2x64xf32>
    %24 = arith.addf %23, %22 : vector<2x64xf32>
    %25 = arith.divf %23, %24 : vector<2x64xf32>
    %26 = vector.extract_strided_slice %25 {offsets = [0, 0], sizes = [2, 32], strides = [1, 1]} : vector<2x64xf32> to vector<2x32xf32>
    %27 = vector.extract_strided_slice %25 {offsets = [0, 32], sizes = [2, 32], strides = [1, 1]} : vector<2x64xf32> to vector<2x32xf32>
    %28 = vector.extract_strided_slice %16 {offsets = [0, 64], sizes = [2, 32], strides = [1, 1]} : vector<2x128xf32> to vector<2x32xf32>
    %29 = vector.extract_strided_slice %17 {offsets = [0, 64], sizes = [2, 32], strides = [1, 1]} : vector<2x128xf32> to vector<2x32xf32>
    %30 = vector.broadcast %9 : vector<1x32xf32> to vector<2x32xf32>
    %31 = arith.addf %29, %30 : vector<2x32xf32>
    %32 = arith.mulf %26, %31 : vector<2x32xf32>
    %33 = arith.addf %28, %32 : vector<2x32xf32>
    %34 = math.tanh %33 : vector<2x32xf32>
    %cst_15 = arith.constant 1.000000e+00 : f32
    %35 = vector.broadcast %cst_15 : f32 to vector<2x32xf32>
    %36 = arith.subf %35, %27 : vector<2x32xf32>
    %37 = arith.mulf %36, %34 : vector<2x32xf32>
    %38 = arith.mulf %27, %15 : vector<2x32xf32>
    %39 = arith.addf %37, %38 : vector<2x32xf32>
    %40 = vector.extract_strided_slice %14 {offsets = [2, 0], sizes = [2, 128], strides = [1, 1]} : vector<16x128xf32> to vector<2x128xf32>
    %cst_16 = arith.constant dense<0.000000e+00> : vector<2x128xf32>
    %41 = tpu.matmul %39, %8, %cst_16 {dimension_numbers = #tpu.dot_dimension_numbers<[1], [0], [0], [1], [0, 0, 1, 1], [], []>} : vector<2x32xf32>, vector<32x128xf32>, vector<2x128xf32> -> vector<2x128xf32>
    %42 = vector.extract_strided_slice %40 {offsets = [0, 0], sizes = [2, 64], strides = [1, 1]} : vector<2x128xf32> to vector<2x64xf32>
    %43 = vector.extract_strided_slice %41 {offsets = [0, 0], sizes = [2, 64], strides = [1, 1]} : vector<2x128xf32> to vector<2x64xf32>
    %44 = arith.addf %42, %43 : vector<2x64xf32>
    %45 = arith.negf %44 : vector<2x64xf32>
    %46 = math.exp %45 : vector<2x64xf32>
    %cst_17 = arith.constant 1.000000e+00 : f32
    %47 = vector.broadcast %cst_17 : f32 to vector<2x64xf32>
    %48 = arith.addf %47, %46 : vector<2x64xf32>
    %49 = arith.divf %47, %48 : vector<2x64xf32>
    %50 = vector.extract_strided_slice %49 {offsets = [0, 0], sizes = [2, 32], strides = [1, 1]} : vector<2x64xf32> to vector<2x32xf32>
    %51 = vector.extract_strided_slice %49 {offsets = [0, 32], sizes = [2, 32], strides = [1, 1]} : vector<2x64xf32> to vector<2x32xf32>
    %52 = vector.extract_strided_slice %40 {offsets = [0, 64], sizes = [2, 32], strides = [1, 1]} : vector<2x128xf32> to vector<2x32xf32>
    %53 = vector.extract_strided_slice %41 {offsets = [0, 64], sizes = [2, 32], strides = [1, 1]} : vector<2x128xf32> to vector<2x32xf32>
    %54 = vector.broadcast %9 : vector<1x32xf32> to vector<2x32xf32>
    %55 = arith.addf %53, %54 : vector<2x32xf32>
    %56 = arith.mulf %50, %55 : vector<2x32xf32>
    %57 = arith.addf %52, %56 : vector<2x32xf32>
    %58 = math.tanh %57 : vector<2x32xf32>
    %cst_18 = arith.constant 1.000000e+00 : f32
    %59 = vector.broadcast %cst_18 : f32 to vector<2x32xf32>
    %60 = arith.subf %59, %51 : vector<2x32xf32>
    %61 = arith.mulf %60, %58 : vector<2x32xf32>
    %62 = arith.mulf %51, %39 : vector<2x32xf32>
    %63 = arith.addf %61, %62 : vector<2x32xf32>
    %64 = vector.extract_strided_slice %14 {offsets = [4, 0], sizes = [2, 128], strides = [1, 1]} : vector<16x128xf32> to vector<2x128xf32>
    %cst_19 = arith.constant dense<0.000000e+00> : vector<2x128xf32>
    %65 = tpu.matmul %63, %8, %cst_19 {dimension_numbers = #tpu.dot_dimension_numbers<[1], [0], [0], [1], [0, 0, 1, 1], [], []>} : vector<2x32xf32>, vector<32x128xf32>, vector<2x128xf32> -> vector<2x128xf32>
    %66 = vector.extract_strided_slice %64 {offsets = [0, 0], sizes = [2, 64], strides = [1, 1]} : vector<2x128xf32> to vector<2x64xf32>
    %67 = vector.extract_strided_slice %65 {offsets = [0, 0], sizes = [2, 64], strides = [1, 1]} : vector<2x128xf32> to vector<2x64xf32>
    %68 = arith.addf %66, %67 : vector<2x64xf32>
    %69 = arith.negf %68 : vector<2x64xf32>
    %70 = math.exp %69 : vector<2x64xf32>
    %cst_20 = arith.constant 1.000000e+00 : f32
    %71 = vector.broadcast %cst_20 : f32 to vector<2x64xf32>
    %72 = arith.addf %71, %70 : vector<2x64xf32>
    %73 = arith.divf %71, %72 : vector<2x64xf32>
    %74 = vector.extract_strided_slice %73 {offsets = [0, 0], sizes = [2, 32], strides = [1, 1]} : vector<2x64xf32> to vector<2x32xf32>
    %75 = vector.extract_strided_slice %73 {offsets = [0, 32], sizes = [2, 32], strides = [1, 1]} : vector<2x64xf32> to vector<2x32xf32>
    %76 = vector.extract_strided_slice %64 {offsets = [0, 64], sizes = [2, 32], strides = [1, 1]} : vector<2x128xf32> to vector<2x32xf32>
    %77 = vector.extract_strided_slice %65 {offsets = [0, 64], sizes = [2, 32], strides = [1, 1]} : vector<2x128xf32> to vector<2x32xf32>
    %78 = vector.broadcast %9 : vector<1x32xf32> to vector<2x32xf32>
    %79 = arith.addf %77, %78 : vector<2x32xf32>
    %80 = arith.mulf %74, %79 : vector<2x32xf32>
    %81 = arith.addf %76, %80 : vector<2x32xf32>
    %82 = math.tanh %81 : vector<2x32xf32>
    %cst_21 = arith.constant 1.000000e+00 : f32
    %83 = vector.broadcast %cst_21 : f32 to vector<2x32xf32>
    %84 = arith.subf %83, %75 : vector<2x32xf32>
    %85 = arith.mulf %84, %82 : vector<2x32xf32>
    %86 = arith.mulf %75, %63 : vector<2x32xf32>
    %87 = arith.addf %85, %86 : vector<2x32xf32>
    %88 = vector.extract_strided_slice %14 {offsets = [6, 0], sizes = [2, 128], strides = [1, 1]} : vector<16x128xf32> to vector<2x128xf32>
    %cst_22 = arith.constant dense<0.000000e+00> : vector<2x128xf32>
    %89 = tpu.matmul %87, %8, %cst_22 {dimension_numbers = #tpu.dot_dimension_numbers<[1], [0], [0], [1], [0, 0, 1, 1], [], []>} : vector<2x32xf32>, vector<32x128xf32>, vector<2x128xf32> -> vector<2x128xf32>
    %90 = vector.extract_strided_slice %88 {offsets = [0, 0], sizes = [2, 64], strides = [1, 1]} : vector<2x128xf32> to vector<2x64xf32>
    %91 = vector.extract_strided_slice %89 {offsets = [0, 0], sizes = [2, 64], strides = [1, 1]} : vector<2x128xf32> to vector<2x64xf32>
    %92 = arith.addf %90, %91 : vector<2x64xf32>
    %93 = arith.negf %92 : vector<2x64xf32>
    %94 = math.exp %93 : vector<2x64xf32>
    %cst_23 = arith.constant 1.000000e+00 : f32
    %95 = vector.broadcast %cst_23 : f32 to vector<2x64xf32>
    %96 = arith.addf %95, %94 : vector<2x64xf32>
    %97 = arith.divf %95, %96 : vector<2x64xf32>
    %98 = vector.extract_strided_slice %97 {offsets = [0, 0], sizes = [2, 32], strides = [1, 1]} : vector<2x64xf32> to vector<2x32xf32>
    %99 = vector.extract_strided_slice %97 {offsets = [0, 32], sizes = [2, 32], strides = [1, 1]} : vector<2x64xf32> to vector<2x32xf32>
    %100 = vector.extract_strided_slice %88 {offsets = [0, 64], sizes = [2, 32], strides = [1, 1]} : vector<2x128xf32> to vector<2x32xf32>
    %101 = vector.extract_strided_slice %89 {offsets = [0, 64], sizes = [2, 32], strides = [1, 1]} : vector<2x128xf32> to vector<2x32xf32>
    %102 = vector.broadcast %9 : vector<1x32xf32> to vector<2x32xf32>
    %103 = arith.addf %101, %102 : vector<2x32xf32>
    %104 = arith.mulf %98, %103 : vector<2x32xf32>
    %105 = arith.addf %100, %104 : vector<2x32xf32>
    %106 = math.tanh %105 : vector<2x32xf32>
    %cst_24 = arith.constant 1.000000e+00 : f32
    %107 = vector.broadcast %cst_24 : f32 to vector<2x32xf32>
    %108 = arith.subf %107, %99 : vector<2x32xf32>
    %109 = arith.mulf %108, %106 : vector<2x32xf32>
    %110 = arith.mulf %99, %87 : vector<2x32xf32>
    %111 = arith.addf %109, %110 : vector<2x32xf32>
    %112 = vector.extract_strided_slice %14 {offsets = [8, 0], sizes = [2, 128], strides = [1, 1]} : vector<16x128xf32> to vector<2x128xf32>
    %cst_25 = arith.constant dense<0.000000e+00> : vector<2x128xf32>
    %113 = tpu.matmul %111, %8, %cst_25 {dimension_numbers = #tpu.dot_dimension_numbers<[1], [0], [0], [1], [0, 0, 1, 1], [], []>} : vector<2x32xf32>, vector<32x128xf32>, vector<2x128xf32> -> vector<2x128xf32>
    %114 = vector.extract_strided_slice %112 {offsets = [0, 0], sizes = [2, 64], strides = [1, 1]} : vector<2x128xf32> to vector<2x64xf32>
    %115 = vector.extract_strided_slice %113 {offsets = [0, 0], sizes = [2, 64], strides = [1, 1]} : vector<2x128xf32> to vector<2x64xf32>
    %116 = arith.addf %114, %115 : vector<2x64xf32>
    %117 = arith.negf %116 : vector<2x64xf32>
    %118 = math.exp %117 : vector<2x64xf32>
    %cst_26 = arith.constant 1.000000e+00 : f32
    %119 = vector.broadcast %cst_26 : f32 to vector<2x64xf32>
    %120 = arith.addf %119, %118 : vector<2x64xf32>
    %121 = arith.divf %119, %120 : vector<2x64xf32>
    %122 = vector.extract_strided_slice %121 {offsets = [0, 0], sizes = [2, 32], strides = [1, 1]} : vector<2x64xf32> to vector<2x32xf32>
    %123 = vector.extract_strided_slice %121 {offsets = [0, 32], sizes = [2, 32], strides = [1, 1]} : vector<2x64xf32> to vector<2x32xf32>
    %124 = vector.extract_strided_slice %112 {offsets = [0, 64], sizes = [2, 32], strides = [1, 1]} : vector<2x128xf32> to vector<2x32xf32>
    %125 = vector.extract_strided_slice %113 {offsets = [0, 64], sizes = [2, 32], strides = [1, 1]} : vector<2x128xf32> to vector<2x32xf32>
    %126 = vector.broadcast %9 : vector<1x32xf32> to vector<2x32xf32>
    %127 = arith.addf %125, %126 : vector<2x32xf32>
    %128 = arith.mulf %122, %127 : vector<2x32xf32>
    %129 = arith.addf %124, %128 : vector<2x32xf32>
    %130 = math.tanh %129 : vector<2x32xf32>
    %cst_27 = arith.constant 1.000000e+00 : f32
    %131 = vector.broadcast %cst_27 : f32 to vector<2x32xf32>
    %132 = arith.subf %131, %123 : vector<2x32xf32>
    %133 = arith.mulf %132, %130 : vector<2x32xf32>
    %134 = arith.mulf %123, %111 : vector<2x32xf32>
    %135 = arith.addf %133, %134 : vector<2x32xf32>
    %136 = vector.extract_strided_slice %14 {offsets = [10, 0], sizes = [2, 128], strides = [1, 1]} : vector<16x128xf32> to vector<2x128xf32>
    %cst_28 = arith.constant dense<0.000000e+00> : vector<2x128xf32>
    %137 = tpu.matmul %135, %8, %cst_28 {dimension_numbers = #tpu.dot_dimension_numbers<[1], [0], [0], [1], [0, 0, 1, 1], [], []>} : vector<2x32xf32>, vector<32x128xf32>, vector<2x128xf32> -> vector<2x128xf32>
    %138 = vector.extract_strided_slice %136 {offsets = [0, 0], sizes = [2, 64], strides = [1, 1]} : vector<2x128xf32> to vector<2x64xf32>
    %139 = vector.extract_strided_slice %137 {offsets = [0, 0], sizes = [2, 64], strides = [1, 1]} : vector<2x128xf32> to vector<2x64xf32>
    %140 = arith.addf %138, %139 : vector<2x64xf32>
    %141 = arith.negf %140 : vector<2x64xf32>
    %142 = math.exp %141 : vector<2x64xf32>
    %cst_29 = arith.constant 1.000000e+00 : f32
    %143 = vector.broadcast %cst_29 : f32 to vector<2x64xf32>
    %144 = arith.addf %143, %142 : vector<2x64xf32>
    %145 = arith.divf %143, %144 : vector<2x64xf32>
    %146 = vector.extract_strided_slice %145 {offsets = [0, 0], sizes = [2, 32], strides = [1, 1]} : vector<2x64xf32> to vector<2x32xf32>
    %147 = vector.extract_strided_slice %145 {offsets = [0, 32], sizes = [2, 32], strides = [1, 1]} : vector<2x64xf32> to vector<2x32xf32>
    %148 = vector.extract_strided_slice %136 {offsets = [0, 64], sizes = [2, 32], strides = [1, 1]} : vector<2x128xf32> to vector<2x32xf32>
    %149 = vector.extract_strided_slice %137 {offsets = [0, 64], sizes = [2, 32], strides = [1, 1]} : vector<2x128xf32> to vector<2x32xf32>
    %150 = vector.broadcast %9 : vector<1x32xf32> to vector<2x32xf32>
    %151 = arith.addf %149, %150 : vector<2x32xf32>
    %152 = arith.mulf %146, %151 : vector<2x32xf32>
    %153 = arith.addf %148, %152 : vector<2x32xf32>
    %154 = math.tanh %153 : vector<2x32xf32>
    %cst_30 = arith.constant 1.000000e+00 : f32
    %155 = vector.broadcast %cst_30 : f32 to vector<2x32xf32>
    %156 = arith.subf %155, %147 : vector<2x32xf32>
    %157 = arith.mulf %156, %154 : vector<2x32xf32>
    %158 = arith.mulf %147, %135 : vector<2x32xf32>
    %159 = arith.addf %157, %158 : vector<2x32xf32>
    %160 = vector.extract_strided_slice %14 {offsets = [12, 0], sizes = [2, 128], strides = [1, 1]} : vector<16x128xf32> to vector<2x128xf32>
    %cst_31 = arith.constant dense<0.000000e+00> : vector<2x128xf32>
    %161 = tpu.matmul %159, %8, %cst_31 {dimension_numbers = #tpu.dot_dimension_numbers<[1], [0], [0], [1], [0, 0, 1, 1], [], []>} : vector<2x32xf32>, vector<32x128xf32>, vector<2x128xf32> -> vector<2x128xf32>
    %162 = vector.extract_strided_slice %160 {offsets = [0, 0], sizes = [2, 64], strides = [1, 1]} : vector<2x128xf32> to vector<2x64xf32>
    %163 = vector.extract_strided_slice %161 {offsets = [0, 0], sizes = [2, 64], strides = [1, 1]} : vector<2x128xf32> to vector<2x64xf32>
    %164 = arith.addf %162, %163 : vector<2x64xf32>
    %165 = arith.negf %164 : vector<2x64xf32>
    %166 = math.exp %165 : vector<2x64xf32>
    %cst_32 = arith.constant 1.000000e+00 : f32
    %167 = vector.broadcast %cst_32 : f32 to vector<2x64xf32>
    %168 = arith.addf %167, %166 : vector<2x64xf32>
    %169 = arith.divf %167, %168 : vector<2x64xf32>
    %170 = vector.extract_strided_slice %169 {offsets = [0, 0], sizes = [2, 32], strides = [1, 1]} : vector<2x64xf32> to vector<2x32xf32>
    %171 = vector.extract_strided_slice %169 {offsets = [0, 32], sizes = [2, 32], strides = [1, 1]} : vector<2x64xf32> to vector<2x32xf32>
    %172 = vector.extract_strided_slice %160 {offsets = [0, 64], sizes = [2, 32], strides = [1, 1]} : vector<2x128xf32> to vector<2x32xf32>
    %173 = vector.extract_strided_slice %161 {offsets = [0, 64], sizes = [2, 32], strides = [1, 1]} : vector<2x128xf32> to vector<2x32xf32>
    %174 = vector.broadcast %9 : vector<1x32xf32> to vector<2x32xf32>
    %175 = arith.addf %173, %174 : vector<2x32xf32>
    %176 = arith.mulf %170, %175 : vector<2x32xf32>
    %177 = arith.addf %172, %176 : vector<2x32xf32>
    %178 = math.tanh %177 : vector<2x32xf32>
    %cst_33 = arith.constant 1.000000e+00 : f32
    %179 = vector.broadcast %cst_33 : f32 to vector<2x32xf32>
    %180 = arith.subf %179, %171 : vector<2x32xf32>
    %181 = arith.mulf %180, %178 : vector<2x32xf32>
    %182 = arith.mulf %171, %159 : vector<2x32xf32>
    %183 = arith.addf %181, %182 : vector<2x32xf32>
    %184 = vector.extract_strided_slice %14 {offsets = [14, 0], sizes = [2, 128], strides = [1, 1]} : vector<16x128xf32> to vector<2x128xf32>
    %cst_34 = arith.constant dense<0.000000e+00> : vector<2x128xf32>
    %185 = tpu.matmul %183, %8, %cst_34 {dimension_numbers = #tpu.dot_dimension_numbers<[1], [0], [0], [1], [0, 0, 1, 1], [], []>} : vector<2x32xf32>, vector<32x128xf32>, vector<2x128xf32> -> vector<2x128xf32>
    %186 = vector.extract_strided_slice %184 {offsets = [0, 0], sizes = [2, 64], strides = [1, 1]} : vector<2x128xf32> to vector<2x64xf32>
    %187 = vector.extract_strided_slice %185 {offsets = [0, 0], sizes = [2, 64], strides = [1, 1]} : vector<2x128xf32> to vector<2x64xf32>
    %188 = arith.addf %186, %187 : vector<2x64xf32>
    %189 = arith.negf %188 : vector<2x64xf32>
    %190 = math.exp %189 : vector<2x64xf32>
    %cst_35 = arith.constant 1.000000e+00 : f32
    %191 = vector.broadcast %cst_35 : f32 to vector<2x64xf32>
    %192 = arith.addf %191, %190 : vector<2x64xf32>
    %193 = arith.divf %191, %192 : vector<2x64xf32>
    %194 = vector.extract_strided_slice %193 {offsets = [0, 0], sizes = [2, 32], strides = [1, 1]} : vector<2x64xf32> to vector<2x32xf32>
    %195 = vector.extract_strided_slice %193 {offsets = [0, 32], sizes = [2, 32], strides = [1, 1]} : vector<2x64xf32> to vector<2x32xf32>
    %196 = vector.extract_strided_slice %184 {offsets = [0, 64], sizes = [2, 32], strides = [1, 1]} : vector<2x128xf32> to vector<2x32xf32>
    %197 = vector.extract_strided_slice %185 {offsets = [0, 64], sizes = [2, 32], strides = [1, 1]} : vector<2x128xf32> to vector<2x32xf32>
    %198 = vector.broadcast %9 : vector<1x32xf32> to vector<2x32xf32>
    %199 = arith.addf %197, %198 : vector<2x32xf32>
    %200 = arith.mulf %194, %199 : vector<2x32xf32>
    %201 = arith.addf %196, %200 : vector<2x32xf32>
    %202 = math.tanh %201 : vector<2x32xf32>
    %cst_36 = arith.constant 1.000000e+00 : f32
    %203 = vector.broadcast %cst_36 : f32 to vector<2x32xf32>
    %204 = arith.subf %203, %195 : vector<2x32xf32>
    %205 = arith.mulf %204, %202 : vector<2x32xf32>
    %206 = arith.mulf %195, %183 : vector<2x32xf32>
    %207 = arith.addf %205, %206 : vector<2x32xf32>
    %208 = tpu.concatenate %39, %63, %87, %111, %135, %159, %183, %207 in 0 : vector<2x32xf32>, vector<2x32xf32>, vector<2x32xf32>, vector<2x32xf32>, vector<2x32xf32>, vector<2x32xf32>, vector<2x32xf32>, vector<2x32xf32> -> vector<16x32xf32>
    %c0_37 = arith.constant 0 : index
    %c0_38 = arith.constant 0 : index
    %209 = vector.load %arg7[%c0_37, %c0_38] : memref<32x128xf32, #tpu.memory_space<vmem>>, vector<32x128xf32>
    %c0_39 = arith.constant 0 : index
    %c0_40 = arith.constant 0 : index
    %210 = vector.load %arg9[%c0_39, %c0_40] : memref<1x32xf32, #tpu.memory_space<vmem>>, vector<1x32xf32>
    %c0_41 = arith.constant 0 : index
    %c0_42 = arith.constant 0 : index
    %211 = vector.load %arg6[%c0_41, %c0_42] : memref<32x128xf32, #tpu.memory_space<vmem>>, vector<32x128xf32>
    %cst_43 = arith.constant dense<0.000000e+00> : vector<16x128xf32>
    %212 = tpu.matmul %208, %211, %cst_43 {dimension_numbers = #tpu.dot_dimension_numbers<[1], [0], [0], [1], [0, 0, 1, 1], [], []>} : vector<16x32xf32>, vector<32x128xf32>, vector<16x128xf32> -> vector<16x128xf32>
    %c0_44 = arith.constant 0 : index
    %c0_45 = arith.constant 0 : index
    %213 = vector.load %arg8[%c0_44, %c0_45] : memref<1x128xf32, #tpu.memory_space<vmem>>, vector<1x128xf32>
    %214 = vector.broadcast %213 : vector<1x128xf32> to vector<16x128xf32>
    %215 = arith.addf %212, %214 : vector<16x128xf32>
    %cst_46 = arith.constant 0.000000e+00 : f32
    %216 = vector.broadcast %cst_46 : f32 to vector<2x32xf32>
    %217 = vector.extract_strided_slice %215 {offsets = [0, 0], sizes = [2, 128], strides = [1, 1]} : vector<16x128xf32> to vector<2x128xf32>
    %cst_47 = arith.constant dense<0.000000e+00> : vector<2x128xf32>
    %218 = tpu.matmul %216, %209, %cst_47 {dimension_numbers = #tpu.dot_dimension_numbers<[1], [0], [0], [1], [0, 0, 1, 1], [], []>} : vector<2x32xf32>, vector<32x128xf32>, vector<2x128xf32> -> vector<2x128xf32>
    %219 = vector.extract_strided_slice %217 {offsets = [0, 0], sizes = [2, 64], strides = [1, 1]} : vector<2x128xf32> to vector<2x64xf32>
    %220 = vector.extract_strided_slice %218 {offsets = [0, 0], sizes = [2, 64], strides = [1, 1]} : vector<2x128xf32> to vector<2x64xf32>
    %221 = arith.addf %219, %220 : vector<2x64xf32>
    %222 = arith.negf %221 : vector<2x64xf32>
    %223 = math.exp %222 : vector<2x64xf32>
    %cst_48 = arith.constant 1.000000e+00 : f32
    %224 = vector.broadcast %cst_48 : f32 to vector<2x64xf32>
    %225 = arith.addf %224, %223 : vector<2x64xf32>
    %226 = arith.divf %224, %225 : vector<2x64xf32>
    %227 = vector.extract_strided_slice %226 {offsets = [0, 0], sizes = [2, 32], strides = [1, 1]} : vector<2x64xf32> to vector<2x32xf32>
    %228 = vector.extract_strided_slice %226 {offsets = [0, 32], sizes = [2, 32], strides = [1, 1]} : vector<2x64xf32> to vector<2x32xf32>
    %229 = vector.extract_strided_slice %217 {offsets = [0, 64], sizes = [2, 32], strides = [1, 1]} : vector<2x128xf32> to vector<2x32xf32>
    %230 = vector.extract_strided_slice %218 {offsets = [0, 64], sizes = [2, 32], strides = [1, 1]} : vector<2x128xf32> to vector<2x32xf32>
    %231 = vector.broadcast %210 : vector<1x32xf32> to vector<2x32xf32>
    %232 = arith.addf %230, %231 : vector<2x32xf32>
    %233 = arith.mulf %227, %232 : vector<2x32xf32>
    %234 = arith.addf %229, %233 : vector<2x32xf32>
    %235 = math.tanh %234 : vector<2x32xf32>
    %cst_49 = arith.constant 1.000000e+00 : f32
    %236 = vector.broadcast %cst_49 : f32 to vector<2x32xf32>
    %237 = arith.subf %236, %228 : vector<2x32xf32>
    %238 = arith.mulf %237, %235 : vector<2x32xf32>
    %239 = arith.mulf %228, %216 : vector<2x32xf32>
    %240 = arith.addf %238, %239 : vector<2x32xf32>
    %241 = vector.extract_strided_slice %215 {offsets = [2, 0], sizes = [2, 128], strides = [1, 1]} : vector<16x128xf32> to vector<2x128xf32>
    %cst_50 = arith.constant dense<0.000000e+00> : vector<2x128xf32>
    %242 = tpu.matmul %240, %209, %cst_50 {dimension_numbers = #tpu.dot_dimension_numbers<[1], [0], [0], [1], [0, 0, 1, 1], [], []>} : vector<2x32xf32>, vector<32x128xf32>, vector<2x128xf32> -> vector<2x128xf32>
    %243 = vector.extract_strided_slice %241 {offsets = [0, 0], sizes = [2, 64], strides = [1, 1]} : vector<2x128xf32> to vector<2x64xf32>
    %244 = vector.extract_strided_slice %242 {offsets = [0, 0], sizes = [2, 64], strides = [1, 1]} : vector<2x128xf32> to vector<2x64xf32>
    %245 = arith.addf %243, %244 : vector<2x64xf32>
    %246 = arith.negf %245 : vector<2x64xf32>
    %247 = math.exp %246 : vector<2x64xf32>
    %cst_51 = arith.constant 1.000000e+00 : f32
    %248 = vector.broadcast %cst_51 : f32 to vector<2x64xf32>
    %249 = arith.addf %248, %247 : vector<2x64xf32>
    %250 = arith.divf %248, %249 : vector<2x64xf32>
    %251 = vector.extract_strided_slice %250 {offsets = [0, 0], sizes = [2, 32], strides = [1, 1]} : vector<2x64xf32> to vector<2x32xf32>
    %252 = vector.extract_strided_slice %250 {offsets = [0, 32], sizes = [2, 32], strides = [1, 1]} : vector<2x64xf32> to vector<2x32xf32>
    %253 = vector.extract_strided_slice %241 {offsets = [0, 64], sizes = [2, 32], strides = [1, 1]} : vector<2x128xf32> to vector<2x32xf32>
    %254 = vector.extract_strided_slice %242 {offsets = [0, 64], sizes = [2, 32], strides = [1, 1]} : vector<2x128xf32> to vector<2x32xf32>
    %255 = vector.broadcast %210 : vector<1x32xf32> to vector<2x32xf32>
    %256 = arith.addf %254, %255 : vector<2x32xf32>
    %257 = arith.mulf %251, %256 : vector<2x32xf32>
    %258 = arith.addf %253, %257 : vector<2x32xf32>
    %259 = math.tanh %258 : vector<2x32xf32>
    %cst_52 = arith.constant 1.000000e+00 : f32
    %260 = vector.broadcast %cst_52 : f32 to vector<2x32xf32>
    %261 = arith.subf %260, %252 : vector<2x32xf32>
    %262 = arith.mulf %261, %259 : vector<2x32xf32>
    %263 = arith.mulf %252, %240 : vector<2x32xf32>
    %264 = arith.addf %262, %263 : vector<2x32xf32>
    %265 = vector.extract_strided_slice %215 {offsets = [4, 0], sizes = [2, 128], strides = [1, 1]} : vector<16x128xf32> to vector<2x128xf32>
    %cst_53 = arith.constant dense<0.000000e+00> : vector<2x128xf32>
    %266 = tpu.matmul %264, %209, %cst_53 {dimension_numbers = #tpu.dot_dimension_numbers<[1], [0], [0], [1], [0, 0, 1, 1], [], []>} : vector<2x32xf32>, vector<32x128xf32>, vector<2x128xf32> -> vector<2x128xf32>
    %267 = vector.extract_strided_slice %265 {offsets = [0, 0], sizes = [2, 64], strides = [1, 1]} : vector<2x128xf32> to vector<2x64xf32>
    %268 = vector.extract_strided_slice %266 {offsets = [0, 0], sizes = [2, 64], strides = [1, 1]} : vector<2x128xf32> to vector<2x64xf32>
    %269 = arith.addf %267, %268 : vector<2x64xf32>
    %270 = arith.negf %269 : vector<2x64xf32>
    %271 = math.exp %270 : vector<2x64xf32>
    %cst_54 = arith.constant 1.000000e+00 : f32
    %272 = vector.broadcast %cst_54 : f32 to vector<2x64xf32>
    %273 = arith.addf %272, %271 : vector<2x64xf32>
    %274 = arith.divf %272, %273 : vector<2x64xf32>
    %275 = vector.extract_strided_slice %274 {offsets = [0, 0], sizes = [2, 32], strides = [1, 1]} : vector<2x64xf32> to vector<2x32xf32>
    %276 = vector.extract_strided_slice %274 {offsets = [0, 32], sizes = [2, 32], strides = [1, 1]} : vector<2x64xf32> to vector<2x32xf32>
    %277 = vector.extract_strided_slice %265 {offsets = [0, 64], sizes = [2, 32], strides = [1, 1]} : vector<2x128xf32> to vector<2x32xf32>
    %278 = vector.extract_strided_slice %266 {offsets = [0, 64], sizes = [2, 32], strides = [1, 1]} : vector<2x128xf32> to vector<2x32xf32>
    %279 = vector.broadcast %210 : vector<1x32xf32> to vector<2x32xf32>
    %280 = arith.addf %278, %279 : vector<2x32xf32>
    %281 = arith.mulf %275, %280 : vector<2x32xf32>
    %282 = arith.addf %277, %281 : vector<2x32xf32>
    %283 = math.tanh %282 : vector<2x32xf32>
    %cst_55 = arith.constant 1.000000e+00 : f32
    %284 = vector.broadcast %cst_55 : f32 to vector<2x32xf32>
    %285 = arith.subf %284, %276 : vector<2x32xf32>
    %286 = arith.mulf %285, %283 : vector<2x32xf32>
    %287 = arith.mulf %276, %264 : vector<2x32xf32>
    %288 = arith.addf %286, %287 : vector<2x32xf32>
    %289 = vector.extract_strided_slice %215 {offsets = [6, 0], sizes = [2, 128], strides = [1, 1]} : vector<16x128xf32> to vector<2x128xf32>
    %cst_56 = arith.constant dense<0.000000e+00> : vector<2x128xf32>
    %290 = tpu.matmul %288, %209, %cst_56 {dimension_numbers = #tpu.dot_dimension_numbers<[1], [0], [0], [1], [0, 0, 1, 1], [], []>} : vector<2x32xf32>, vector<32x128xf32>, vector<2x128xf32> -> vector<2x128xf32>
    %291 = vector.extract_strided_slice %289 {offsets = [0, 0], sizes = [2, 64], strides = [1, 1]} : vector<2x128xf32> to vector<2x64xf32>
    %292 = vector.extract_strided_slice %290 {offsets = [0, 0], sizes = [2, 64], strides = [1, 1]} : vector<2x128xf32> to vector<2x64xf32>
    %293 = arith.addf %291, %292 : vector<2x64xf32>
    %294 = arith.negf %293 : vector<2x64xf32>
    %295 = math.exp %294 : vector<2x64xf32>
    %cst_57 = arith.constant 1.000000e+00 : f32
    %296 = vector.broadcast %cst_57 : f32 to vector<2x64xf32>
    %297 = arith.addf %296, %295 : vector<2x64xf32>
    %298 = arith.divf %296, %297 : vector<2x64xf32>
    %299 = vector.extract_strided_slice %298 {offsets = [0, 0], sizes = [2, 32], strides = [1, 1]} : vector<2x64xf32> to vector<2x32xf32>
    %300 = vector.extract_strided_slice %298 {offsets = [0, 32], sizes = [2, 32], strides = [1, 1]} : vector<2x64xf32> to vector<2x32xf32>
    %301 = vector.extract_strided_slice %289 {offsets = [0, 64], sizes = [2, 32], strides = [1, 1]} : vector<2x128xf32> to vector<2x32xf32>
    %302 = vector.extract_strided_slice %290 {offsets = [0, 64], sizes = [2, 32], strides = [1, 1]} : vector<2x128xf32> to vector<2x32xf32>
    %303 = vector.broadcast %210 : vector<1x32xf32> to vector<2x32xf32>
    %304 = arith.addf %302, %303 : vector<2x32xf32>
    %305 = arith.mulf %299, %304 : vector<2x32xf32>
    %306 = arith.addf %301, %305 : vector<2x32xf32>
    %307 = math.tanh %306 : vector<2x32xf32>
    %cst_58 = arith.constant 1.000000e+00 : f32
    %308 = vector.broadcast %cst_58 : f32 to vector<2x32xf32>
    %309 = arith.subf %308, %300 : vector<2x32xf32>
    %310 = arith.mulf %309, %307 : vector<2x32xf32>
    %311 = arith.mulf %300, %288 : vector<2x32xf32>
    %312 = arith.addf %310, %311 : vector<2x32xf32>
    %313 = vector.extract_strided_slice %215 {offsets = [8, 0], sizes = [2, 128], strides = [1, 1]} : vector<16x128xf32> to vector<2x128xf32>
    %cst_59 = arith.constant dense<0.000000e+00> : vector<2x128xf32>
    %314 = tpu.matmul %312, %209, %cst_59 {dimension_numbers = #tpu.dot_dimension_numbers<[1], [0], [0], [1], [0, 0, 1, 1], [], []>} : vector<2x32xf32>, vector<32x128xf32>, vector<2x128xf32> -> vector<2x128xf32>
    %315 = vector.extract_strided_slice %313 {offsets = [0, 0], sizes = [2, 64], strides = [1, 1]} : vector<2x128xf32> to vector<2x64xf32>
    %316 = vector.extract_strided_slice %314 {offsets = [0, 0], sizes = [2, 64], strides = [1, 1]} : vector<2x128xf32> to vector<2x64xf32>
    %317 = arith.addf %315, %316 : vector<2x64xf32>
    %318 = arith.negf %317 : vector<2x64xf32>
    %319 = math.exp %318 : vector<2x64xf32>
    %cst_60 = arith.constant 1.000000e+00 : f32
    %320 = vector.broadcast %cst_60 : f32 to vector<2x64xf32>
    %321 = arith.addf %320, %319 : vector<2x64xf32>
    %322 = arith.divf %320, %321 : vector<2x64xf32>
    %323 = vector.extract_strided_slice %322 {offsets = [0, 0], sizes = [2, 32], strides = [1, 1]} : vector<2x64xf32> to vector<2x32xf32>
    %324 = vector.extract_strided_slice %322 {offsets = [0, 32], sizes = [2, 32], strides = [1, 1]} : vector<2x64xf32> to vector<2x32xf32>
    %325 = vector.extract_strided_slice %313 {offsets = [0, 64], sizes = [2, 32], strides = [1, 1]} : vector<2x128xf32> to vector<2x32xf32>
    %326 = vector.extract_strided_slice %314 {offsets = [0, 64], sizes = [2, 32], strides = [1, 1]} : vector<2x128xf32> to vector<2x32xf32>
    %327 = vector.broadcast %210 : vector<1x32xf32> to vector<2x32xf32>
    %328 = arith.addf %326, %327 : vector<2x32xf32>
    %329 = arith.mulf %323, %328 : vector<2x32xf32>
    %330 = arith.addf %325, %329 : vector<2x32xf32>
    %331 = math.tanh %330 : vector<2x32xf32>
    %cst_61 = arith.constant 1.000000e+00 : f32
    %332 = vector.broadcast %cst_61 : f32 to vector<2x32xf32>
    %333 = arith.subf %332, %324 : vector<2x32xf32>
    %334 = arith.mulf %333, %331 : vector<2x32xf32>
    %335 = arith.mulf %324, %312 : vector<2x32xf32>
    %336 = arith.addf %334, %335 : vector<2x32xf32>
    %337 = vector.extract_strided_slice %215 {offsets = [10, 0], sizes = [2, 128], strides = [1, 1]} : vector<16x128xf32> to vector<2x128xf32>
    %cst_62 = arith.constant dense<0.000000e+00> : vector<2x128xf32>
    %338 = tpu.matmul %336, %209, %cst_62 {dimension_numbers = #tpu.dot_dimension_numbers<[1], [0], [0], [1], [0, 0, 1, 1], [], []>} : vector<2x32xf32>, vector<32x128xf32>, vector<2x128xf32> -> vector<2x128xf32>
    %339 = vector.extract_strided_slice %337 {offsets = [0, 0], sizes = [2, 64], strides = [1, 1]} : vector<2x128xf32> to vector<2x64xf32>
    %340 = vector.extract_strided_slice %338 {offsets = [0, 0], sizes = [2, 64], strides = [1, 1]} : vector<2x128xf32> to vector<2x64xf32>
    %341 = arith.addf %339, %340 : vector<2x64xf32>
    %342 = arith.negf %341 : vector<2x64xf32>
    %343 = math.exp %342 : vector<2x64xf32>
    %cst_63 = arith.constant 1.000000e+00 : f32
    %344 = vector.broadcast %cst_63 : f32 to vector<2x64xf32>
    %345 = arith.addf %344, %343 : vector<2x64xf32>
    %346 = arith.divf %344, %345 : vector<2x64xf32>
    %347 = vector.extract_strided_slice %346 {offsets = [0, 0], sizes = [2, 32], strides = [1, 1]} : vector<2x64xf32> to vector<2x32xf32>
    %348 = vector.extract_strided_slice %346 {offsets = [0, 32], sizes = [2, 32], strides = [1, 1]} : vector<2x64xf32> to vector<2x32xf32>
    %349 = vector.extract_strided_slice %337 {offsets = [0, 64], sizes = [2, 32], strides = [1, 1]} : vector<2x128xf32> to vector<2x32xf32>
    %350 = vector.extract_strided_slice %338 {offsets = [0, 64], sizes = [2, 32], strides = [1, 1]} : vector<2x128xf32> to vector<2x32xf32>
    %351 = vector.broadcast %210 : vector<1x32xf32> to vector<2x32xf32>
    %352 = arith.addf %350, %351 : vector<2x32xf32>
    %353 = arith.mulf %347, %352 : vector<2x32xf32>
    %354 = arith.addf %349, %353 : vector<2x32xf32>
    %355 = math.tanh %354 : vector<2x32xf32>
    %cst_64 = arith.constant 1.000000e+00 : f32
    %356 = vector.broadcast %cst_64 : f32 to vector<2x32xf32>
    %357 = arith.subf %356, %348 : vector<2x32xf32>
    %358 = arith.mulf %357, %355 : vector<2x32xf32>
    %359 = arith.mulf %348, %336 : vector<2x32xf32>
    %360 = arith.addf %358, %359 : vector<2x32xf32>
    %361 = vector.extract_strided_slice %215 {offsets = [12, 0], sizes = [2, 128], strides = [1, 1]} : vector<16x128xf32> to vector<2x128xf32>
    %cst_65 = arith.constant dense<0.000000e+00> : vector<2x128xf32>
    %362 = tpu.matmul %360, %209, %cst_65 {dimension_numbers = #tpu.dot_dimension_numbers<[1], [0], [0], [1], [0, 0, 1, 1], [], []>} : vector<2x32xf32>, vector<32x128xf32>, vector<2x128xf32> -> vector<2x128xf32>
    %363 = vector.extract_strided_slice %361 {offsets = [0, 0], sizes = [2, 64], strides = [1, 1]} : vector<2x128xf32> to vector<2x64xf32>
    %364 = vector.extract_strided_slice %362 {offsets = [0, 0], sizes = [2, 64], strides = [1, 1]} : vector<2x128xf32> to vector<2x64xf32>
    %365 = arith.addf %363, %364 : vector<2x64xf32>
    %366 = arith.negf %365 : vector<2x64xf32>
    %367 = math.exp %366 : vector<2x64xf32>
    %cst_66 = arith.constant 1.000000e+00 : f32
    %368 = vector.broadcast %cst_66 : f32 to vector<2x64xf32>
    %369 = arith.addf %368, %367 : vector<2x64xf32>
    %370 = arith.divf %368, %369 : vector<2x64xf32>
    %371 = vector.extract_strided_slice %370 {offsets = [0, 0], sizes = [2, 32], strides = [1, 1]} : vector<2x64xf32> to vector<2x32xf32>
    %372 = vector.extract_strided_slice %370 {offsets = [0, 32], sizes = [2, 32], strides = [1, 1]} : vector<2x64xf32> to vector<2x32xf32>
    %373 = vector.extract_strided_slice %361 {offsets = [0, 64], sizes = [2, 32], strides = [1, 1]} : vector<2x128xf32> to vector<2x32xf32>
    %374 = vector.extract_strided_slice %362 {offsets = [0, 64], sizes = [2, 32], strides = [1, 1]} : vector<2x128xf32> to vector<2x32xf32>
    %375 = vector.broadcast %210 : vector<1x32xf32> to vector<2x32xf32>
    %376 = arith.addf %374, %375 : vector<2x32xf32>
    %377 = arith.mulf %371, %376 : vector<2x32xf32>
    %378 = arith.addf %373, %377 : vector<2x32xf32>
    %379 = math.tanh %378 : vector<2x32xf32>
    %cst_67 = arith.constant 1.000000e+00 : f32
    %380 = vector.broadcast %cst_67 : f32 to vector<2x32xf32>
    %381 = arith.subf %380, %372 : vector<2x32xf32>
    %382 = arith.mulf %381, %379 : vector<2x32xf32>
    %383 = arith.mulf %372, %360 : vector<2x32xf32>
    %384 = arith.addf %382, %383 : vector<2x32xf32>
    %385 = vector.extract_strided_slice %215 {offsets = [14, 0], sizes = [2, 128], strides = [1, 1]} : vector<16x128xf32> to vector<2x128xf32>
    %cst_68 = arith.constant dense<0.000000e+00> : vector<2x128xf32>
    %386 = tpu.matmul %384, %209, %cst_68 {dimension_numbers = #tpu.dot_dimension_numbers<[1], [0], [0], [1], [0, 0, 1, 1], [], []>} : vector<2x32xf32>, vector<32x128xf32>, vector<2x128xf32> -> vector<2x128xf32>
    %387 = vector.extract_strided_slice %385 {offsets = [0, 0], sizes = [2, 64], strides = [1, 1]} : vector<2x128xf32> to vector<2x64xf32>
    %388 = vector.extract_strided_slice %386 {offsets = [0, 0], sizes = [2, 64], strides = [1, 1]} : vector<2x128xf32> to vector<2x64xf32>
    %389 = arith.addf %387, %388 : vector<2x64xf32>
    %390 = arith.negf %389 : vector<2x64xf32>
    %391 = math.exp %390 : vector<2x64xf32>
    %cst_69 = arith.constant 1.000000e+00 : f32
    %392 = vector.broadcast %cst_69 : f32 to vector<2x64xf32>
    %393 = arith.addf %392, %391 : vector<2x64xf32>
    %394 = arith.divf %392, %393 : vector<2x64xf32>
    %395 = vector.extract_strided_slice %394 {offsets = [0, 0], sizes = [2, 32], strides = [1, 1]} : vector<2x64xf32> to vector<2x32xf32>
    %396 = vector.extract_strided_slice %394 {offsets = [0, 32], sizes = [2, 32], strides = [1, 1]} : vector<2x64xf32> to vector<2x32xf32>
    %397 = vector.extract_strided_slice %385 {offsets = [0, 64], sizes = [2, 32], strides = [1, 1]} : vector<2x128xf32> to vector<2x32xf32>
    %398 = vector.extract_strided_slice %386 {offsets = [0, 64], sizes = [2, 32], strides = [1, 1]} : vector<2x128xf32> to vector<2x32xf32>
    %399 = vector.broadcast %210 : vector<1x32xf32> to vector<2x32xf32>
    %400 = arith.addf %398, %399 : vector<2x32xf32>
    %401 = arith.mulf %395, %400 : vector<2x32xf32>
    %402 = arith.addf %397, %401 : vector<2x32xf32>
    %403 = math.tanh %402 : vector<2x32xf32>
    %cst_70 = arith.constant 1.000000e+00 : f32
    %404 = vector.broadcast %cst_70 : f32 to vector<2x32xf32>
    %405 = arith.subf %404, %396 : vector<2x32xf32>
    %406 = arith.mulf %405, %403 : vector<2x32xf32>
    %407 = arith.mulf %396, %384 : vector<2x32xf32>
    %408 = arith.addf %406, %407 : vector<2x32xf32>
    %c0_71 = arith.constant 0 : index
    %c0_72 = arith.constant 0 : index
    %409 = vector.load %arg10[%c0_71, %c0_72] : memref<32x4xf32, #tpu.memory_space<vmem>>, vector<32x4xf32>
    %cst_73 = arith.constant dense<0.000000e+00> : vector<2x4xf32>
    %410 = tpu.matmul %408, %409, %cst_73 {dimension_numbers = #tpu.dot_dimension_numbers<[1], [0], [0], [1], [0, 0, 1, 1], [], []>} : vector<2x32xf32>, vector<32x4xf32>, vector<2x4xf32> -> vector<2x4xf32>
    %c0_74 = arith.constant 0 : index
    %c0_75 = arith.constant 0 : index
    %411 = vector.load %arg11[%c0_74, %c0_75] : memref<1x4xf32, #tpu.memory_space<vmem>>, vector<1x4xf32>
    %412 = vector.broadcast %411 : vector<1x4xf32> to vector<2x4xf32>
    %413 = arith.addf %410, %412 : vector<2x4xf32>
    %c0_76 = arith.constant 0 : index
    %c0_77 = arith.constant 0 : index
    %414 = vector.load %arg12[%c0_76, %c0_77] : memref<2x4xf32, #tpu.memory_space<vmem>>, vector<2x4xf32>
    tpu.vector_store %arg12[%c0_76, %c0_77], %413 {strides = array<i32>} : memref<2x4xf32, #tpu.memory_space<vmem>>, vector<2x4xf32>,
    return
  }
}

</mosaic_0001>

<llo_original>
// kernel: tpu_custom_call.1
$region0: #{tpu_custom_call.1}
  #allocation0 [shape = 'u32[]', space=smem, size = 0x4, offset = 0x4, fixed_abs, tag = 'smem constant byte address 0x4 - core index']
  #allocation1 [shape = 'u32[144,128]{1,0:T(1,128)}', space=vmem, size = 0x12000, scoped, tag = 'internal scratch']
  %s0 = inlined_call_operand.vmem [shape: s32[16,1], index: 0, kind: input, shape index: {}]
  %s1 = inlined_call_operand.vmem [shape: f32[56,32], index: 1, kind: input, shape index: {}]
  %s2 = inlined_call_operand.vmem [shape: f32[32,128], index: 2, kind: input, shape index: {}]
  %s3 = inlined_call_operand.vmem [shape: f32[32,128], index: 3, kind: input, shape index: {}]
  %s4 = inlined_call_operand.vmem [shape: f32[1,128], index: 4, kind: input, shape index: {}]
  %s5 = inlined_call_operand.vmem [shape: f32[1,32], index: 5, kind: input, shape index: {}]
  %s6 = inlined_call_operand.vmem [shape: f32[32,128], index: 6, kind: input, shape index: {}]
  %s7 = inlined_call_operand.vmem [shape: f32[32,128], index: 7, kind: input, shape index: {}]
  %s8 = inlined_call_operand.vmem [shape: f32[1,128], index: 8, kind: input, shape index: {}]
  %s9 = inlined_call_operand.vmem [shape: f32[1,32], index: 9, kind: input, shape index: {}]
  %s10 = inlined_call_operand.vmem [shape: f32[32,4], index: 10, kind: input, shape index: {}]
  %s11 = inlined_call_operand.vmem [shape: f32[1,4], index: 11, kind: input, shape index: {}]
  %s12 = inlined_call_operand.hbm [shape: f32[2,4], index: 12, kind: output, shape index: {}]
  %s13 = sld [smem:[#allocation0]]
  $region58: #{tpu_custom_call.1} parent=0
    _
  %s15 = ssub.s32 1, %s13
  %s16 = scalar_select 0, %s15, %s13
  $region1: #{tpu_custom_call.1} parent=0
    #allocation2 [shape = 'u8[1024]{0}', space=vmem, size = 0x400, scoped, tag = 'output window, operand 0, single buffered']
    #allocation3 [shape = 's32[1]{0}', space=sflag, size = 0x4, scoped, tag = 'scoped memory for tpu_custom_call.1']
    %17 = vsyncpa [#allocation3], 0
    // Predicated region
    $region2: #{tpu_custom_call.1} parent=1 // pred_check
      _
    $region3: #{tpu_custom_call.1} parent=1 // pred_check_branch
      %19 = sbr.rel (0) target = $region5
    $region4: #{tpu_custom_call.1} parent=1 // pred_region
      _
    $region5: #{tpu_custom_call.1} parent=1 // pred_fallthru
      _
    // Predicated region
    $region6: #{tpu_custom_call.1} parent=1 // pred_check
      _
    $region7: #{tpu_custom_call.1} parent=1 // pred_check_branch
      %21 = sbr.rel (0) target = $region9
    $region8: #{tpu_custom_call.1} parent=1 // pred_region
      _
    $region9: #{tpu_custom_call.1} parent=1 // pred_fallthru
      _
    // Predicated region
    $region10: #{tpu_custom_call.1} parent=1 // pred_check
      _
    $region11: #{tpu_custom_call.1} parent=1 // pred_check_branch
      %23 = sbr.rel (0) target = $region13
    $region12: #{tpu_custom_call.1} parent=1 // pred_region
      _
    $region13: #{tpu_custom_call.1} parent=1 // pred_fallthru
      _
    // Predicated region
    $region14: #{tpu_custom_call.1} parent=1 // pred_check
      _
    $region15: #{tpu_custom_call.1} parent=1 // pred_check_branch
      %25 = sbr.rel (0) target = $region17
    $region16: #{tpu_custom_call.1} parent=1 // pred_region
      _
    $region17: #{tpu_custom_call.1} parent=1 // pred_fallthru
      _
    // Predicated region
    $region18: #{tpu_custom_call.1} parent=1 // pred_check
      _
    $region19: #{tpu_custom_call.1} parent=1 // pred_check_branch
      %27 = sbr.rel (0) target = $region21
    $region20: #{tpu_custom_call.1} parent=1 // pred_region
      _
    $region21: #{tpu_custom_call.1} parent=1 // pred_fallthru
      _
    // Predicated region
    $region22: #{tpu_custom_call.1} parent=1 // pred_check
      _
    $region23: #{tpu_custom_call.1} parent=1 // pred_check_branch
      %29 = sbr.rel (0) target = $region25
    $region24: #{tpu_custom_call.1} parent=1 // pred_region
      _
    $region25: #{tpu_custom_call.1} parent=1 // pred_fallthru
      _
    // Predicated region
    $region26: #{tpu_custom_call.1} parent=1 // pred_check
      _
    $region27: #{tpu_custom_call.1} parent=1 // pred_check_branch
      %31 = sbr.rel (0) target = $region29
    $region28: #{tpu_custom_call.1} parent=1 // pred_region
      _
    $region29: #{tpu_custom_call.1} parent=1 // pred_fallthru
      _
    // Predicated region
    $region30: #{tpu_custom_call.1} parent=1 // pred_check
      _
    $region31: #{tpu_custom_call.1} parent=1 // pred_check_branch
      %33 = sbr.rel (0) target = $region33
    $region32: #{tpu_custom_call.1} parent=1 // pred_region
      _
    $region33: #{tpu_custom_call.1} parent=1 // pred_fallthru
      _
    // Predicated region
    $region34: #{tpu_custom_call.1} parent=1 // pred_check
      _
    $region35: #{tpu_custom_call.1} parent=1 // pred_check_branch
      %35 = sbr.rel (0) target = $region37
    $region36: #{tpu_custom_call.1} parent=1 // pred_region
      _
    $region37: #{tpu_custom_call.1} parent=1 // pred_fallthru
      _
    // Predicated region
    $region38: #{tpu_custom_call.1} parent=1 // pred_check
      _
    $region39: #{tpu_custom_call.1} parent=1 // pred_check_branch
      %37 = sbr.rel (0) target = $region41
    $region40: #{tpu_custom_call.1} parent=1 // pred_region
      _
    $region41: #{tpu_custom_call.1} parent=1 // pred_fallthru
      _
    // Predicated region
    $region42: #{tpu_custom_call.1} parent=1 // pred_check
      _
    $region43: #{tpu_custom_call.1} parent=1 // pred_check_branch
      %39 = sbr.rel (0) target = $region45
    $region44: #{tpu_custom_call.1} parent=1 // pred_region
      _
    $region45: #{tpu_custom_call.1} parent=1 // pred_fallthru
      _
    // Predicated region
    $region46: #{tpu_custom_call.1} parent=1 // pred_check
      _
    $region47: #{tpu_custom_call.1} parent=1 // pred_check_branch
      %41 = sbr.rel (0) target = $region49
    $region48: #{tpu_custom_call.1} parent=1 // pred_region
      _
    $region49: #{tpu_custom_call.1} parent=1 // pred_fallthru
      _
    %v42 = vld [vmem:[%s0] sm:$0xff]
    %v43 = vld [vmem:[%s0 + $0x8] sm:$0xff]
    %v44 = vlaneseq
    %v45 = vand.u32 %v44, 127
    %46 = vset.pattern.permute.xlu0 0
    %47 = vperm.xlu0 %46, %v42
    %v48 = vpop.permute.xlu0 %47
    %49 = vset.pattern.permute.xlu0 0
    %50 = vperm.xlu0 %49, %v43
    %v51 = vpop.permute.xlu0 %50
    %vm52 = vcmp.eq.s32.totalorder %v45, %v48
    %vm53 = vcmp.eq.s32.totalorder %v45, %v51
    %v54 = vsel %vm52, 1, 0
    %v55 = vsel %vm53, 1, 0
    %v56 = vcvt.s32.f32 %v54
    %v57 = vcvt.s32.f32 %v55
    %v58 = vld [vmem:[%s1] sm:$0xff]
    %v59 = vld [vmem:[%s1 + $0x8] sm:$0xff]
    %v60 = vld [vmem:[%s1 + $0x10] sm:$0xff]
    %v61 = vld [vmem:[%s1 + $0x18] sm:$0xff]
    %v62 = vld [vmem:[%s1 + $0x20] sm:$0xff]
    %v63 = vld [vmem:[%s1 + $0x28] sm:$0xff]
    %v64 = vld [vmem:[%s1 + $0x30] sm:$0xff]
    %vm65 = vcmask 457728
    %v67 = vsel %vm65, %v56, 0
    %v70 = vsel %vm65, %v57, 0
    %72 = vmatprep.subr.mxu0 0.0
    %73 = vmatpush1.msra.mxu0 %v58
    %74 = vmatprep.subr.mxu0 0.0
    %75 = vmatpush1.msra.mxu0 %v59
    %76 = vmatprep.subr.mxu0 0.0
    %77 = vmatpush1.msra.mxu0 %v60
    %78 = vmatprep.subr.mxu0 0.0
    %79 = vmatpush1.msra.mxu0 %v61
    %80 = vmatprep.subr.mxu0 0.0
    %81 = vmatpush1.msra.mxu0 %v62
    %82 = vmatprep.subr.mxu0 0.0
    %83 = vmatpush1.msra.mxu0 %v63
    %84 = vmatprep.subr.mxu0 0.0
    %85 = vmatpush1.msra.mxu0 %v64
    %86 = vmatprep.subr.mxu0 0.0
    %87 = vmatpush1.msra.mxu0 0.0
    %88 = vmatprep.subr.mxu0 0.0
    %89 = vmatpush1.msra.mxu0 0.0
    %90 = vmatprep.subr.mxu0 0.0
    %91 = vmatpush1.msra.mxu0 0.0
    %92 = vmatprep.subr.mxu0 0.0
    %93 = vmatpush1.msra.mxu0 0.0
    %94 = vmatprep.subr.mxu0 0.0
    %95 = vmatpush1.msra.mxu0 0.0
    %96 = vmatprep.subr.mxu0 0.0
    %97 = vmatpush1.msra.mxu0 0.0
    %98 = vmatprep.subr.mxu0 0.0
    %99 = vmatpush1.msra.mxu0 0.0
    %100 = vmatprep.subr.mxu0 0.0
    %101 = vmatpush1.msra.mxu0 0.0
    %102 = vmatprep.subr.mxu0 0.0
    %103 = vmatpush1.msra.mxu0 0.0
    %104 = vmatprep.subr.mxu0 0.0
    %105 = vmatpush1.msra.mxu0 0.0
    %106 = vmatprep.subr.mxu0 0.0
    %107 = vmatpush1.msra.mxu0 0.0
    %108 = vmatprep.subr.mxu0 0.0
    %109 = vmatpush1.msra.mxu0 0.0
    %110 = vmatprep.subr.mxu0 0.0
    %111 = vmatpush1.msra.mxu0 0.0
    %112 = vmatprep.subr.mxu0 0.0
    %113 = vmatpush1.msra.mxu0 0.0
    %114 = vmatprep.subr.mxu0 0.0
    %115 = vmatpush1.msra.mxu0 0.0
    %116 = vmatprep.subr.mxu0 0.0
    %117 = vmatpush1.msra.mxu0 0.0
    %118 = vmatprep.subr.mxu0 0.0
    %119 = vmatpush1.msra.mxu0 0.0
    %120 = vmatprep.subr.mxu0 0.0
    %121 = vmatpush1.msra.mxu0 0.0
    %122 = vmatprep.subr.mxu0 0.0
    %123 = vmatpush1.msra.mxu0 0.0
    %124 = vmatprep.subr.mxu0 0.0
    %125 = vmatpush1.msra.mxu0 0.0
    %126 = vmatprep.subr.mxu0 0.0
    %127 = vmatpush1.msra.mxu0 0.0
    %128 = vmatprep.subr.mxu0 0.0
    %129 = vmatpush1.msra.mxu0 0.0
    %130 = vmatprep.subr.mxu0 0.0
    %131 = vmatpush1.msra.mxu0 0.0
    %132 = vmatprep.subr.mxu0 0.0
    %133 = vmatpush1.msra.mxu0 0.0
    %134 = vmatprep.subr.mxu0 0.0
    %135 = vmatpush1.msra.mxu0 0.0
    %136 = vmatprep.mubr.f32.mxu0 0.0
    %137 = vmatmul.mubr.f32.gmra.mrb[0].mxu0 %v67
    %v138 = vpop.f32.mrb[0].mxu0
    %v139 = vadd.f32 0.0, %v138
    %v140 = vpop.f32.mrb[0].mxu0
    %141 = vmatprep.mubr.f32.mxu0 0.0
    %142 = vmatmul.mubr.f32.gmra.mrb[0].mxu0 %v70
    %v143 = vpop.f32.mrb[0].mxu0
    %v144 = vadd.f32 0.0, %v143
    %v145 = vpop.f32.mrb[0].mxu0
    %146 = vdwg.mxu0
    %v147 = vld [vmem:[%s3] sm:$0xff]
    %v148 = vld [vmem:[%s3 + $0x8] sm:$0xff]
    %v149 = vld [vmem:[%s3 + $0x10] sm:$0xff]
    %v150 = vld [vmem:[%s3 + $0x18] sm:$0xff]
    %v151 = vld [vmem:[%s5] sm:$0x1]
    %v152 = vld [vmem:[%s2] sm:$0xff]
    %v153 = vld [vmem:[%s2 + $0x8] sm:$0xff]
    %v154 = vld [vmem:[%s2 + $0x10] sm:$0xff]
    %v155 = vld [vmem:[%s2 + $0x18] sm:$0xff]
    %v156 = vld [vmem:[%s4] sm:$0x1]
    %v158 = vlaneseq
    %v159 = vshrl.u32 %v158, 7
    %v160 = vsub.s32 0, %v159
    %v161 = vrot.slane %v156, %v160
    %vm163 = vcmask 261120
    %v165 = vsel %vm163, %v139, 0
    %v168 = vsel %vm163, %v144, 0
    %170 = vmatprep.subr.mxu0 0.0
    %171 = vmatpush1.msra.mxu0 %v152
    %172 = vmatprep.subr.mxu0 0.0
    %173 = vmatpush1.msra.mxu0 %v153
    %174 = vmatprep.subr.mxu0 0.0
    %175 = vmatpush1.msra.mxu0 %v154
    %176 = vmatprep.subr.mxu0 0.0
    %177 = vmatpush1.msra.mxu0 %v155
    %178 = vmatprep.subr.mxu0 0.0
    %179 = vmatpush1.msra.mxu0 0.0
    %180 = vmatprep.subr.mxu0 0.0
    %181 = vmatpush1.msra.mxu0 0.0
    %182 = vmatprep.subr.mxu0 0.0
    %183 = vmatpush1.msra.mxu0 0.0
    %184 = vmatprep.subr.mxu0 0.0
    %185 = vmatpush1.msra.mxu0 0.0
    %186 = vmatprep.subr.mxu0 0.0
    %187 = vmatpush1.msra.mxu0 0.0
    %188 = vmatprep.subr.mxu0 0.0
    %189 = vmatpush1.msra.mxu0 0.0
    %190 = vmatprep.subr.mxu0 0.0
    %191 = vmatpush1.msra.mxu0 0.0
    %192 = vmatprep.subr.mxu0 0.0
    %193 = vmatpush1.msra.mxu0 0.0
    %194 = vmatprep.subr.mxu0 0.0
    %195 = vmatpush1.msra.mxu0 0.0
    %196 = vmatprep.subr.mxu0 0.0
    %197 = vmatpush1.msra.mxu0 0.0
    %198 = vmatprep.subr.mxu0 0.0
    %199 = vmatpush1.msra.mxu0 0.0
    %200 = vmatprep.subr.mxu0 0.0
    %201 = vmatpush1.msra.mxu0 0.0
    %202 = vmatprep.subr.mxu0 0.0
    %203 = vmatpush1.msra.mxu0 0.0
    %204 = vmatprep.subr.mxu0 0.0
    %205 = vmatpush1.msra.mxu0 0.0
    %206 = vmatprep.subr.mxu0 0.0
    %207 = vmatpush1.msra.mxu0 0.0
    %208 = vmatprep.subr.mxu0 0.0
    %209 = vmatpush1.msra.mxu0 0.0
    %210 = vmatprep.subr.mxu0 0.0
    %211 = vmatpush1.msra.mxu0 0.0
    %212 = vmatprep.subr.mxu0 0.0
    %213 = vmatpush1.msra.mxu0 0.0
    %214 = vmatprep.subr.mxu0 0.0
    %215 = vmatpush1.msra.mxu0 0.0
    %216 = vmatprep.subr.mxu0 0.0
    %217 = vmatpush1.msra.mxu0 0.0
    %218 = vmatprep.subr.mxu0 0.0
    %219 = vmatpush1.msra.mxu0 0.0
    %220 = vmatprep.subr.mxu0 0.0
    %221 = vmatpush1.msra.mxu0 0.0
    %222 = vmatprep.subr.mxu0 0.0
    %223 = vmatpush1.msra.mxu0 0.0
    %224 = vmatprep.subr.mxu0 0.0
    %225 = vmatpush1.msra.mxu0 0.0
    %226 = vmatprep.subr.mxu0 0.0
    %227 = vmatpush1.msra.mxu0 0.0
    %228 = vmatprep.subr.mxu0 0.0
    %229 = vmatpush1.msra.mxu0 0.0
    %230 = vmatprep.subr.mxu0 0.0
    %231 = vmatpush1.msra.mxu0 0.0
    %232 = vmatprep.subr.mxu0 0.0
    %233 = vmatpush1.msra.mxu0 0.0
    %234 = vmatprep.mubr.f32.mxu0 0.0
    %235 = vmatmul.mubr.f32.gmra.mrb[0].mxu0 %v165
    %v236 = vpop.f32.mrb[0].mxu0
    %v237 = vadd.f32 %v161, %v236
    %v238 = vpop.f32.mrb[0].mxu0
    %239 = vmatprep.mubr.f32.mxu0 0.0
    %240 = vmatmul.mubr.f32.gmra.mrb[0].mxu0 %v168
    %v241 = vpop.f32.mrb[0].mxu0
    %v242 = vadd.f32 %v161, %v241
    %v243 = vpop.f32.mrb[0].mxu0
    %244 = vdwg.mxu0
    %v246 = vsel %vm163, 0.0, 0
    %248 = vmatprep.subr.mxu0 0.0
    %249 = vmatpush1.msra.mxu0 %v147
    %250 = vmatprep.subr.mxu0 0.0
    %251 = vmatpush1.msra.mxu0 %v148
    %252 = vmatprep.subr.mxu0 0.0
    %253 = vmatpush1.msra.mxu0 %v149
    %254 = vmatprep.subr.mxu0 0.0
    %255 = vmatpush1.msra.mxu0 %v150
    %256 = vmatprep.subr.mxu0 0.0
    %257 = vmatpush1.msra.mxu0 0.0
    %258 = vmatprep.subr.mxu0 0.0
    %259 = vmatpush1.msra.mxu0 0.0
    %260 = vmatprep.subr.mxu0 0.0
    %261 = vmatpush1.msra.mxu0 0.0
    %262 = vmatprep.subr.mxu0 0.0
    %263 = vmatpush1.msra.mxu0 0.0
    %264 = vmatprep.subr.mxu0 0.0
    %265 = vmatpush1.msra.mxu0 0.0
    %266 = vmatprep.subr.mxu0 0.0
    %267 = vmatpush1.msra.mxu0 0.0
    %268 = vmatprep.subr.mxu0 0.0
    %269 = vmatpush1.msra.mxu0 0.0
    %270 = vmatprep.subr.mxu0 0.0
    %271 = vmatpush1.msra.mxu0 0.0
    %272 = vmatprep.subr.mxu0 0.0
    %273 = vmatpush1.msra.mxu0 0.0
    %274 = vmatprep.subr.mxu0 0.0
    %275 = vmatpush1.msra.mxu0 0.0
    %276 = vmatprep.subr.mxu0 0.0
    %277 = vmatpush1.msra.mxu0 0.0
    %278 = vmatprep.subr.mxu0 0.0
    %279 = vmatpush1.msra.mxu0 0.0
    %280 = vmatprep.subr.mxu0 0.0
    %281 = vmatpush1.msra.mxu0 0.0
    %282 = vmatprep.subr.mxu0 0.0
    %283 = vmatpush1.msra.mxu0 0.0
    %284 = vmatprep.subr.mxu0 0.0
    %285 = vmatpush1.msra.mxu0 0.0
    %286 = vmatprep.subr.mxu0 0.0
    %287 = vmatpush1.msra.mxu0 0.0
    %288 = vmatprep.subr.mxu0 0.0
    %289 = vmatpush1.msra.mxu0 0.0
    %290 = vmatprep.subr.mxu0 0.0
    %291 = vmatpush1.msra.mxu0 0.0
    %292 = vmatprep.subr.mxu0 0.0
    %293 = vmatpush1.msra.mxu0 0.0
    %294 = vmatprep.subr.mxu0 0.0
    %295 = vmatpush1.msra.mxu0 0.0
    %296 = vmatprep.subr.mxu0 0.0
    %297 = vmatpush1.msra.mxu0 0.0
    %298 = vmatprep.subr.mxu0 0.0
    %299 = vmatpush1.msra.mxu0 0.0
    %300 = vmatprep.subr.mxu0 0.0
    %301 = vmatpush1.msra.mxu0 0.0
    %302 = vmatprep.subr.mxu0 0.0
    %303 = vmatpush1.msra.mxu0 0.0
    %304 = vmatprep.subr.mxu0 0.0
    %305 = vmatpush1.msra.mxu0 0.0
    %306 = vmatprep.subr.mxu0 0.0
    %307 = vmatpush1.msra.mxu0 0.0
    %308 = vmatprep.subr.mxu0 0.0
    %309 = vmatpush1.msra.mxu0 0.0
    %310 = vmatprep.subr.mxu0 0.0
    %311 = vmatpush1.msra.mxu0 0.0
    %312 = vmatprep.mubr.f32.mxu0 0.0
    %313 = vmatmul.mubr.f32.gmra.mrb[0].mxu0 %v246
    %v314 = vpop.f32.mrb[0].mxu0
    %v315 = vadd.f32 0.0, %v314
    %v316 = vpop.f32.mrb[0].mxu0
    %317 = vdwg.mxu0
    %v318 = vadd.f32 %v237, %v315
    %v319 = vxor.u32 %v318, 2147483648
    %v320 = vmul.f32 %v319, 1.442695
    %v321 = vpow.pop %v320
    %v322 = vadd.f32 %v321, 1.0
    %v323 = vrcp.pop %v322
    %v324 = vmul.f32 1.0, %v323
    %v326 = vlaneseq
    %v327 = vshrl.u32 %v326, 7
    %v328 = vsub.s32 0, %v327
    %v329 = vrot.slane %v151, %v328
    %330 = vrot.lane.b32.xlu0 %v329, 64
    %v331 = vpop.permute.xlu0 %330
    %v333 = vadd.f32 %v315, %v331
    %335 = vrot.lane.b32.xlu0 %v333, 64
    %v336 = vpop.permute.xlu0 %335
    %v338 = vmul.f32 %v324, %v336
    %340 = vrot.lane.b32.xlu0 %v338, 64
    %v341 = vpop.permute.xlu0 %340
    %v343 = vadd.f32 %v237, %v341
    %v344 = vtanh.pop %v343
    %v345 = vsub.f32 1.0, %v324
    %347 = vrot.lane.b32.xlu0 %v344, 96
    %v348 = vpop.permute.xlu0 %347
    %v350 = vmul.f32 %v345, %v348
    %v351 = vmul.f32 %v324, 0.0
    %v352 = vadd.f32 %v350, %v351
    %354 = vrot.lane.b32.xlu0 %v352, 96
    %v355 = vpop.permute.xlu0 %354
    %v356 = vsel %vm163, %v355, 0
    %358 = vmatprep.subr.mxu0 0.0
    %359 = vmatpush1.msra.mxu0 %v147
    %360 = vmatprep.subr.mxu0 0.0
    %361 = vmatpush1.msra.mxu0 %v148
    %362 = vmatprep.subr.mxu0 0.0
    %363 = vmatpush1.msra.mxu0 %v149
    %364 = vmatprep.subr.mxu0 0.0
    %365 = vmatpush1.msra.mxu0 %v150
    %366 = vmatprep.subr.mxu0 0.0
    %367 = vmatpush1.msra.mxu0 0.0
    %368 = vmatprep.subr.mxu0 0.0
    %369 = vmatpush1.msra.mxu0 0.0
    %370 = vmatprep.subr.mxu0 0.0
    %371 = vmatpush1.msra.mxu0 0.0
    %372 = vmatprep.subr.mxu0 0.0
    %373 = vmatpush1.msra.mxu0 0.0
    %374 = vmatprep.subr.mxu0 0.0
    %375 = vmatpush1.msra.mxu0 0.0
    %376 = vmatprep.subr.mxu0 0.0
    %377 = vmatpush1.msra.mxu0 0.0
    %378 = vmatprep.subr.mxu0 0.0
    %379 = vmatpush1.msra.mxu0 0.0
    %380 = vmatprep.subr.mxu0 0.0
    %381 = vmatpush1.msra.mxu0 0.0
    %382 = vmatprep.subr.mxu0 0.0
    %383 = vmatpush1.msra.mxu0 0.0
    %384 = vmatprep.subr.mxu0 0.0
    %385 = vmatpush1.msra.mxu0 0.0
    %386 = vmatprep.subr.mxu0 0.0
    %387 = vmatpush1.msra.mxu0 0.0
    %388 = vmatprep.subr.mxu0 0.0
    %389 = vmatpush1.msra.mxu0 0.0
    %390 = vmatprep.subr.mxu0 0.0
    %391 = vmatpush1.msra.mxu0 0.0
    %392 = vmatprep.subr.mxu0 0.0
    %393 = vmatpush1.msra.mxu0 0.0
    %394 = vmatprep.subr.mxu0 0.0
    %395 = vmatpush1.msra.mxu0 0.0
    %396 = vmatprep.subr.mxu0 0.0
    %397 = vmatpush1.msra.mxu0 0.0
    %398 = vmatprep.subr.mxu0 0.0
    %399 = vmatpush1.msra.mxu0 0.0
    %400 = vmatprep.subr.mxu0 0.0
    %401 = vmatpush1.msra.mxu0 0.0
    %402 = vmatprep.subr.mxu0 0.0
    %403 = vmatpush1.msra.mxu0 0.0
    %404 = vmatprep.subr.mxu0 0.0
    %405 = vmatpush1.msra.mxu0 0.0
    %406 = vmatprep.subr.mxu0 0.0
    %407 = vmatpush1.msra.mxu0 0.0
    %408 = vmatprep.subr.mxu0 0.0
    %409 = vmatpush1.msra.mxu0 0.0
    %410 = vmatprep.subr.mxu0 0.0
    %411 = vmatpush1.msra.mxu0 0.0
    %412 = vmatprep.subr.mxu0 0.0
    %413 = vmatpush1.msra.mxu0 0.0
    %414 = vmatprep.subr.mxu0 0.0
    %415 = vmatpush1.msra.mxu0 0.0
    %416 = vmatprep.subr.mxu0 0.0
    %417 = vmatpush1.msra.mxu0 0.0
    %418 = vmatprep.subr.mxu0 0.0
    %419 = vmatpush1.msra.mxu0 0.0
    %420 = vmatprep.subr.mxu0 0.0
    %421 = vmatpush1.msra.mxu0 0.0
    %422 = vmatprep.mubr.f32.mxu0 0.0
    %423 = vmatmul.mubr.f32.gmra.mrb[0].mxu0 %v356
    %v424 = vpop.f32.mrb[0].mxu0
    %v425 = vadd.f32 0.0, %v424
    %v426 = vpop.f32.mrb[0].mxu0
    %427 = vdwg.mxu0
    %v429 = vrot.slane %v425, 6
    %v431 = vadd.f32 %v237, %v429
    %v432 = vxor.u32 %v431, 2147483648
    %v433 = vmul.f32 %v432, 1.442695
    %v434 = vpow.pop %v433
    %v435 = vadd.f32 %v434, 1.0
    %v436 = vrcp.pop %v435
    %v437 = vmul.f32 1.0, %v436
    %v438 = vadd.f32 %v425, %v331
    %v440 = vrot.slane %v438, 6
    %441 = vrot.lane.b32.xlu0 %v440, 64
    %v442 = vpop.permute.xlu0 %441
    %v444 = vmul.f32 %v437, %v442
    %446 = vrot.lane.b32.xlu0 %v444, 64
    %v447 = vpop.permute.xlu0 %446
    %v449 = vadd.f32 %v237, %v447
    %v450 = vtanh.pop %v449
    %v451 = vsub.f32 1.0, %v437
    %453 = vrot.lane.b32.xlu0 %v450, 96
    %v454 = vpop.permute.xlu0 %453
    %v456 = vmul.f32 %v451, %v454
    %v457 = vrot.slane %v352, 6
    %v459 = vmul.f32 %v437, %v457
    %v460 = vadd.f32 %v456, %v459
    %v462 = vrot.slane %v460, 2
    %463 = vrot.lane.b32.xlu0 %v462, 96
    %v464 = vpop.permute.xlu0 %463
    %v465 = vsel %vm163, %v464, 0
    %467 = vmatprep.subr.mxu0 0.0
    %468 = vmatpush1.msra.mxu0 %v147
    %469 = vmatprep.subr.mxu0 0.0
    %470 = vmatpush1.msra.mxu0 %v148
    %471 = vmatprep.subr.mxu0 0.0
    %472 = vmatpush1.msra.mxu0 %v149
    %473 = vmatprep.subr.mxu0 0.0
    %474 = vmatpush1.msra.mxu0 %v150
    %475 = vmatprep.subr.mxu0 0.0
    %476 = vmatpush1.msra.mxu0 0.0
    %477 = vmatprep.subr.mxu0 0.0
    %478 = vmatpush1.msra.mxu0 0.0
    %479 = vmatprep.subr.mxu0 0.0
    %480 = vmatpush1.msra.mxu0 0.0
    %481 = vmatprep.subr.mxu0 0.0
    %482 = vmatpush1.msra.mxu0 0.0
    %483 = vmatprep.subr.mxu0 0.0
    %484 = vmatpush1.msra.mxu0 0.0
    %485 = vmatprep.subr.mxu0 0.0
    %486 = vmatpush1.msra.mxu0 0.0
    %487 = vmatprep.subr.mxu0 0.0
    %488 = vmatpush1.msra.mxu0 0.0
    %489 = vmatprep.subr.mxu0 0.0
    %490 = vmatpush1.msra.mxu0 0.0
    %491 = vmatprep.subr.mxu0 0.0
    %492 = vmatpush1.msra.mxu0 0.0
    %493 = vmatprep.subr.mxu0 0.0
    %494 = vmatpush1.msra.mxu0 0.0
    %495 = vmatprep.subr.mxu0 0.0
    %496 = vmatpush1.msra.mxu0 0.0
    %497 = vmatprep.subr.mxu0 0.0
    %498 = vmatpush1.msra.mxu0 0.0
    %499 = vmatprep.subr.mxu0 0.0
    %500 = vmatpush1.msra.mxu0 0.0
    %501 = vmatprep.subr.mxu0 0.0
    %502 = vmatpush1.msra.mxu0 0.0
    %503 = vmatprep.subr.mxu0 0.0
    %504 = vmatpush1.msra.mxu0 0.0
    %505 = vmatprep.subr.mxu0 0.0
    %506 = vmatpush1.msra.mxu0 0.0
    %507 = vmatprep.subr.mxu0 0.0
    %508 = vmatpush1.msra.mxu0 0.0
    %509 = vmatprep.subr.mxu0 0.0
    %510 = vmatpush1.msra.mxu0 0.0
    %511 = vmatprep.subr.mxu0 0.0
    %512 = vmatpush1.msra.mxu0 0.0
    %513 = vmatprep.subr.mxu0 0.0
    %514 = vmatpush1.msra.mxu0 0.0
    %515 = vmatprep.subr.mxu0 0.0
    %516 = vmatpush1.msra.mxu0 0.0
    %517 = vmatprep.subr.mxu0 0.0
    %518 = vmatpush1.msra.mxu0 0.0
    %519 = vmatprep.subr.mxu0 0.0
    %520 = vmatpush1.msra.mxu0 0.0
    %521 = vmatprep.subr.mxu0 0.0
    %522 = vmatpush1.msra.mxu0 0.0
    %523 = vmatprep.subr.mxu0 0.0
    %524 = vmatpush1.msra.mxu0 0.0
    %525 = vmatprep.subr.mxu0 0.0
    %526 = vmatpush1.msra.mxu0 0.0
    %527 = vmatprep.subr.mxu0 0.0
    %528 = vmatpush1.msra.mxu0 0.0
    %529 = vmatprep.subr.mxu0 0.0
    %530 = vmatpush1.msra.mxu0 0.0
    %531 = vmatprep.mubr.f32.mxu0 0.0
    %532 = vmatmul.mubr.f32.gmra.mrb[0].mxu0 %v465
    %v533 = vpop.f32.mrb[0].mxu0
    %v534 = vadd.f32 0.0, %v533
    %v535 = vpop.f32.mrb[0].mxu0
    %536 = vdwg.mxu0
    %v538 = vrot.slane %v534, 4
    %v540 = vadd.f32 %v237, %v538
    %v541 = vxor.u32 %v540, 2147483648
    %v542 = vmul.f32 %v541, 1.442695
    %v543 = vpow.pop %v542
    %v544 = vadd.f32 %v543, 1.0
    %v545 = vrcp.pop %v544
    %v546 = vmul.f32 1.0, %v545
    %v547 = vadd.f32 %v534, %v331
    %v549 = vrot.slane %v547, 4
    %550 = vrot.lane.b32.xlu0 %v549, 64
    %v551 = vpop.permute.xlu0 %550
    %v553 = vmul.f32 %v546, %v551
    %555 = vrot.lane.b32.xlu0 %v553, 64
    %v556 = vpop.permute.xlu0 %555
    %v558 = vadd.f32 %v237, %v556
    %v559 = vtanh.pop %v558
    %v560 = vsub.f32 1.0, %v546
    %562 = vrot.lane.b32.xlu0 %v559, 96
    %v563 = vpop.permute.xlu0 %562
    %v565 = vmul.f32 %v560, %v563
    %v566 = vrot.slane %v460, 6
    %v568 = vmul.f32 %v546, %v566
    %v569 = vadd.f32 %v565, %v568
    %v571 = vrot.slane %v569, 4
    %572 = vrot.lane.b32.xlu0 %v571, 96
    %v573 = vpop.permute.xlu0 %572
    %v574 = vsel %vm163, %v573, 0
    %576 = vmatprep.subr.mxu0 0.0
    %577 = vmatpush1.msra.mxu0 %v147
    %578 = vmatprep.subr.mxu0 0.0
    %579 = vmatpush1.msra.mxu0 %v148
    %580 = vmatprep.subr.mxu0 0.0
    %581 = vmatpush1.msra.mxu0 %v149
    %582 = vmatprep.subr.mxu0 0.0
    %583 = vmatpush1.msra.mxu0 %v150
    %584 = vmatprep.subr.mxu0 0.0
    %585 = vmatpush1.msra.mxu0 0.0
    %586 = vmatprep.subr.mxu0 0.0
    %587 = vmatpush1.msra.mxu0 0.0
    %588 = vmatprep.subr.mxu0 0.0
    %589 = vmatpush1.msra.mxu0 0.0
    %590 = vmatprep.subr.mxu0 0.0
    %591 = vmatpush1.msra.mxu0 0.0
    %592 = vmatprep.subr.mxu0 0.0
    %593 = vmatpush1.msra.mxu0 0.0
    %594 = vmatprep.subr.mxu0 0.0
    %595 = vmatpush1.msra.mxu0 0.0
    %596 = vmatprep.subr.mxu0 0.0
    %597 = vmatpush1.msra.mxu0 0.0
    %598 = vmatprep.subr.mxu0 0.0
    %599 = vmatpush1.msra.mxu0 0.0
    %600 = vmatprep.subr.mxu0 0.0
    %601 = vmatpush1.msra.mxu0 0.0
    %602 = vmatprep.subr.mxu0 0.0
    %603 = vmatpush1.msra.mxu0 0.0
    %604 = vmatprep.subr.mxu0 0.0
    %605 = vmatpush1.msra.mxu0 0.0
    %606 = vmatprep.subr.mxu0 0.0
    %607 = vmatpush1.msra.mxu0 0.0
    %608 = vmatprep.subr.mxu0 0.0
    %609 = vmatpush1.msra.mxu0 0.0
    %610 = vmatprep.subr.mxu0 0.0
    %611 = vmatpush1.msra.mxu0 0.0
    %612 = vmatprep.subr.mxu0 0.0
    %613 = vmatpush1.msra.mxu0 0.0
    %614 = vmatprep.subr.mxu0 0.0
    %615 = vmatpush1.msra.mxu0 0.0
    %616 = vmatprep.subr.mxu0 0.0
    %617 = vmatpush1.msra.mxu0 0.0
    %618 = vmatprep.subr.mxu0 0.0
    %619 = vmatpush1.msra.mxu0 0.0
    %620 = vmatprep.subr.mxu0 0.0
    %621 = vmatpush1.msra.mxu0 0.0
    %622 = vmatprep.subr.mxu0 0.0
    %623 = vmatpush1.msra.mxu0 0.0
    %624 = vmatprep.subr.mxu0 0.0
    %625 = vmatpush1.msra.mxu0 0.0
    %626 = vmatprep.subr.mxu0 0.0
    %627 = vmatpush1.msra.mxu0 0.0
    %628 = vmatprep.subr.mxu0 0.0
    %629 = vmatpush1.msra.mxu0 0.0
    %630 = vmatprep.subr.mxu0 0.0
    %631 = vmatpush1.msra.mxu0 0.0
    %632 = vmatprep.subr.mxu0 0.0
    %633 = vmatpush1.msra.mxu0 0.0
    %634 = vmatprep.subr.mxu0 0.0
    %635 = vmatpush1.msra.mxu0 0.0
    %636 = vmatprep.subr.mxu0 0.0
    %637 = vmatpush1.msra.mxu0 0.0
    %638 = vmatprep.subr.mxu0 0.0
    %639 = vmatpush1.msra.mxu0 0.0
    %640 = vmatprep.mubr.f32.mxu0 0.0
    %641 = vmatmul.mubr.f32.gmra.mrb[0].mxu0 %v574
    %v642 = vpop.f32.mrb[0].mxu0
    %v643 = vadd.f32 0.0, %v642
    %v644 = vpop.f32.mrb[0].mxu0
    %645 = vdwg.mxu0
    %v647 = vrot.slane %v643, 2
    %v649 = vadd.f32 %v237, %v647
    %v650 = vxor.u32 %v649, 2147483648
    %v651 = vmul.f32 %v650, 1.442695
    %v652 = vpow.pop %v651
    %v653 = vadd.f32 %v652, 1.0
    %v654 = vrcp.pop %v653
    %v655 = vmul.f32 1.0, %v654
    %v656 = vadd.f32 %v643, %v331
    %v658 = vrot.slane %v656, 2
    %659 = vrot.lane.b32.xlu0 %v658, 64
    %v660 = vpop.permute.xlu0 %659
    %v662 = vmul.f32 %v655, %v660
    %664 = vrot.lane.b32.xlu0 %v662, 64
    %v665 = vpop.permute.xlu0 %664
    %v667 = vadd.f32 %v237, %v665
    %v668 = vtanh.pop %v667
    %v669 = vsub.f32 1.0, %v655
    %671 = vrot.lane.b32.xlu0 %v668, 96
    %v672 = vpop.permute.xlu0 %671
    %v674 = vmul.f32 %v669, %v672
    %v675 = vrot.slane %v569, 6
    %v677 = vmul.f32 %v655, %v675
    %v678 = vadd.f32 %v674, %v677
    %v680 = vrot.slane %v678, 6
    %681 = vrot.lane.b32.xlu0 %v680, 96
    %v682 = vpop.permute.xlu0 %681
    %v683 = vsel %vm163, %v682, 0
    %685 = vmatprep.subr.mxu0 0.0
    %686 = vmatpush1.msra.mxu0 %v147
    %687 = vmatprep.subr.mxu0 0.0
    %688 = vmatpush1.msra.mxu0 %v148
    %689 = vmatprep.subr.mxu0 0.0
    %690 = vmatpush1.msra.mxu0 %v149
    %691 = vmatprep.subr.mxu0 0.0
    %692 = vmatpush1.msra.mxu0 %v150
    %693 = vmatprep.subr.mxu0 0.0
    %694 = vmatpush1.msra.mxu0 0.0
    %695 = vmatprep.subr.mxu0 0.0
    %696 = vmatpush1.msra.mxu0 0.0
    %697 = vmatprep.subr.mxu0 0.0
    %698 = vmatpush1.msra.mxu0 0.0
    %699 = vmatprep.subr.mxu0 0.0
    %700 = vmatpush1.msra.mxu0 0.0
    %701 = vmatprep.subr.mxu0 0.0
    %702 = vmatpush1.msra.mxu0 0.0
    %703 = vmatprep.subr.mxu0 0.0
    %704 = vmatpush1.msra.mxu0 0.0
    %705 = vmatprep.subr.mxu0 0.0
    %706 = vmatpush1.msra.mxu0 0.0
    %707 = vmatprep.subr.mxu0 0.0
    %708 = vmatpush1.msra.mxu0 0.0
    %709 = vmatprep.subr.mxu0 0.0
    %710 = vmatpush1.msra.mxu0 0.0
    %711 = vmatprep.subr.mxu0 0.0
    %712 = vmatpush1.msra.mxu0 0.0
    %713 = vmatprep.subr.mxu0 0.0
    %714 = vmatpush1.msra.mxu0 0.0
    %715 = vmatprep.subr.mxu0 0.0
    %716 = vmatpush1.msra.mxu0 0.0
    %717 = vmatprep.subr.mxu0 0.0
    %718 = vmatpush1.msra.mxu0 0.0
    %719 = vmatprep.subr.mxu0 0.0
    %720 = vmatpush1.msra.mxu0 0.0
    %721 = vmatprep.subr.mxu0 0.0
    %722 = vmatpush1.msra.mxu0 0.0
    %723 = vmatprep.subr.mxu0 0.0
    %724 = vmatpush1.msra.mxu0 0.0
    %725 = vmatprep.subr.mxu0 0.0
    %726 = vmatpush1.msra.mxu0 0.0
    %727 = vmatprep.subr.mxu0 0.0
    %728 = vmatpush1.msra.mxu0 0.0
    %729 = vmatprep.subr.mxu0 0.0
    %730 = vmatpush1.msra.mxu0 0.0
    %731 = vmatprep.subr.mxu0 0.0
    %732 = vmatpush1.msra.mxu0 0.0
    %733 = vmatprep.subr.mxu0 0.0
    %734 = vmatpush1.msra.mxu0 0.0
    %735 = vmatprep.subr.mxu0 0.0
    %736 = vmatpush1.msra.mxu0 0.0
    %737 = vmatprep.subr.mxu0 0.0
    %738 = vmatpush1.msra.mxu0 0.0
    %739 = vmatprep.subr.mxu0 0.0
    %740 = vmatpush1.msra.mxu0 0.0
    %741 = vmatprep.subr.mxu0 0.0
    %742 = vmatpush1.msra.mxu0 0.0
    %743 = vmatprep.subr.mxu0 0.0
    %744 = vmatpush1.msra.mxu0 0.0
    %745 = vmatprep.subr.mxu0 0.0
    %746 = vmatpush1.msra.mxu0 0.0
    %747 = vmatprep.subr.mxu0 0.0
    %748 = vmatpush1.msra.mxu0 0.0
    %749 = vmatprep.mubr.f32.mxu0 0.0
    %750 = vmatmul.mubr.f32.gmra.mrb[0].mxu0 %v683
    %v751 = vpop.f32.mrb[0].mxu0
    %v752 = vadd.f32 0.0, %v751
    %v753 = vpop.f32.mrb[0].mxu0
    %754 = vdwg.mxu0
    %v755 = vadd.f32 %v242, %v752
    %v756 = vxor.u32 %v755, 2147483648
    %v757 = vmul.f32 %v756, 1.442695
    %v758 = vpow.pop %v757
    %v759 = vadd.f32 %v758, 1.0
    %v760 = vrcp.pop %v759
    %v761 = vmul.f32 1.0, %v760
    %v762 = vadd.f32 %v752, %v331
    %764 = vrot.lane.b32.xlu0 %v762, 64
    %v765 = vpop.permute.xlu0 %764
    %v767 = vmul.f32 %v761, %v765
    %769 = vrot.lane.b32.xlu0 %v767, 64
    %v770 = vpop.permute.xlu0 %769
    %v772 = vadd.f32 %v242, %v770
    %v773 = vtanh.pop %v772
    %v774 = vsub.f32 1.0, %v761
    %776 = vrot.lane.b32.xlu0 %v773, 96
    %v777 = vpop.permute.xlu0 %776
    %v779 = vmul.f32 %v774, %v777
    %v781 = vmul.f32 %v761, %v680
    %v782 = vadd.f32 %v779, %v781
    %784 = vrot.lane.b32.xlu0 %v782, 96
    %v785 = vpop.permute.xlu0 %784
    %v786 = vsel %vm163, %v785, 0
    %788 = vmatprep.subr.mxu0 0.0
    %789 = vmatpush1.msra.mxu0 %v147
    %790 = vmatprep.subr.mxu0 0.0
    %791 = vmatpush1.msra.mxu0 %v148
    %792 = vmatprep.subr.mxu0 0.0
    %793 = vmatpush1.msra.mxu0 %v149
    %794 = vmatprep.subr.mxu0 0.0
    %795 = vmatpush1.msra.mxu0 %v150
    %796 = vmatprep.subr.mxu0 0.0
    %797 = vmatpush1.msra.mxu0 0.0
    %798 = vmatprep.subr.mxu0 0.0
    %799 = vmatpush1.msra.mxu0 0.0
    %800 = vmatprep.subr.mxu0 0.0
    %801 = vmatpush1.msra.mxu0 0.0
    %802 = vmatprep.subr.mxu0 0.0
    %803 = vmatpush1.msra.mxu0 0.0
    %804 = vmatprep.subr.mxu0 0.0
    %805 = vmatpush1.msra.mxu0 0.0
    %806 = vmatprep.subr.mxu0 0.0
    %807 = vmatpush1.msra.mxu0 0.0
    %808 = vmatprep.subr.mxu0 0.0
    %809 = vmatpush1.msra.mxu0 0.0
    %810 = vmatprep.subr.mxu0 0.0
    %811 = vmatpush1.msra.mxu0 0.0
    %812 = vmatprep.subr.mxu0 0.0
    %813 = vmatpush1.msra.mxu0 0.0
    %814 = vmatprep.subr.mxu0 0.0
    %815 = vmatpush1.msra.mxu0 0.0
    %816 = vmatprep.subr.mxu0 0.0
    %817 = vmatpush1.msra.mxu0 0.0
    %818 = vmatprep.subr.mxu0 0.0
    %819 = vmatpush1.msra.mxu0 0.0
    %820 = vmatprep.subr.mxu0 0.0
    %821 = vmatpush1.msra.mxu0 0.0
    %822 = vmatprep.subr.mxu0 0.0
    %823 = vmatpush1.msra.mxu0 0.0
    %824 = vmatprep.subr.mxu0 0.0
    %825 = vmatpush1.msra.mxu0 0.0
    %826 = vmatprep.subr.mxu0 0.0
    %827 = vmatpush1.msra.mxu0 0.0
    %828 = vmatprep.subr.mxu0 0.0
    %829 = vmatpush1.msra.mxu0 0.0
    %830 = vmatprep.subr.mxu0 0.0
    %831 = vmatpush1.msra.mxu0 0.0
    %832 = vmatprep.subr.mxu0 0.0
    %833 = vmatpush1.msra.mxu0 0.0
    %834 = vmatprep.subr.mxu0 0.0
    %835 = vmatpush1.msra.mxu0 0.0
    %836 = vmatprep.subr.mxu0 0.0
    %837 = vmatpush1.msra.mxu0 0.0
    %838 = vmatprep.subr.mxu0 0.0
    %839 = vmatpush1.msra.mxu0 0.0
    %840 = vmatprep.subr.mxu0 0.0
    %841 = vmatpush1.msra.mxu0 0.0
    %842 = vmatprep.subr.mxu0 0.0
    %843 = vmatpush1.msra.mxu0 0.0
    %844 = vmatprep.subr.mxu0 0.0
    %845 = vmatpush1.msra.mxu0 0.0
    %846 = vmatprep.subr.mxu0 0.0
    %847 = vmatpush1.msra.mxu0 0.0
    %848 = vmatprep.subr.mxu0 0.0
    %849 = vmatpush1.msra.mxu0 0.0
    %850 = vmatprep.subr.mxu0 0.0
    %851 = vmatpush1.msra.mxu0 0.0
    %852 = vmatprep.mubr.f32.mxu0 0.0
    %853 = vmatmul.mubr.f32.gmra.mrb[0].mxu0 %v786
    %v854 = vpop.f32.mrb[0].mxu0
    %v855 = vadd.f32 0.0, %v854
    %v856 = vpop.f32.mrb[0].mxu0
    %857 = vdwg.mxu0
    %v859 = vrot.slane %v855, 6
    %v861 = vadd.f32 %v242, %v859
    %v862 = vxor.u32 %v861, 2147483648
    %v863 = vmul.f32 %v862, 1.442695
    %v864 = vpow.pop %v863
    %v865 = vadd.f32 %v864, 1.0
    %v866 = vrcp.pop %v865
    %v867 = vmul.f32 1.0, %v866
    %v868 = vadd.f32 %v855, %v331
    %v870 = vrot.slane %v868, 6
    %871 = vrot.lane.b32.xlu0 %v870, 64
    %v872 = vpop.permute.xlu0 %871
    %v874 = vmul.f32 %v867, %v872
    %876 = vrot.lane.b32.xlu0 %v874, 64
    %v877 = vpop.permute.xlu0 %876
    %v879 = vadd.f32 %v242, %v877
    %v880 = vtanh.pop %v879
    %v881 = vsub.f32 1.0, %v867
    %883 = vrot.lane.b32.xlu0 %v880, 96
    %v884 = vpop.permute.xlu0 %883
    %v886 = vmul.f32 %v881, %v884
    %v887 = vrot.slane %v782, 6
    %v889 = vmul.f32 %v867, %v887
    %v890 = vadd.f32 %v886, %v889
    %v892 = vrot.slane %v890, 2
    %893 = vrot.lane.b32.xlu0 %v892, 96
    %v894 = vpop.permute.xlu0 %893
    %v895 = vsel %vm163, %v894, 0
    %897 = vmatprep.subr.mxu0 0.0
    %898 = vmatpush1.msra.mxu0 %v147
    %899 = vmatprep.subr.mxu0 0.0
    %900 = vmatpush1.msra.mxu0 %v148
    %901 = vmatprep.subr.mxu0 0.0
    %902 = vmatpush1.msra.mxu0 %v149
    %903 = vmatprep.subr.mxu0 0.0
    %904 = vmatpush1.msra.mxu0 %v150
    %905 = vmatprep.subr.mxu0 0.0
    %906 = vmatpush1.msra.mxu0 0.0
    %907 = vmatprep.subr.mxu0 0.0
    %908 = vmatpush1.msra.mxu0 0.0
    %909 = vmatprep.subr.mxu0 0.0
    %910 = vmatpush1.msra.mxu0 0.0
    %911 = vmatprep.subr.mxu0 0.0
    %912 = vmatpush1.msra.mxu0 0.0
    %913 = vmatprep.subr.mxu0 0.0
    %914 = vmatpush1.msra.mxu0 0.0
    %915 = vmatprep.subr.mxu0 0.0
    %916 = vmatpush1.msra.mxu0 0.0
    %917 = vmatprep.subr.mxu0 0.0
    %918 = vmatpush1.msra.mxu0 0.0
    %919 = vmatprep.subr.mxu0 0.0
    %920 = vmatpush1.msra.mxu0 0.0
    %921 = vmatprep.subr.mxu0 0.0
    %922 = vmatpush1.msra.mxu0 0.0
    %923 = vmatprep.subr.mxu0 0.0
    %924 = vmatpush1.msra.mxu0 0.0
    %925 = vmatprep.subr.mxu0 0.0
    %926 = vmatpush1.msra.mxu0 0.0
    %927 = vmatprep.subr.mxu0 0.0
    %928 = vmatpush1.msra.mxu0 0.0
    %929 = vmatprep.subr.mxu0 0.0
    %930 = vmatpush1.msra.mxu0 0.0
    %931 = vmatprep.subr.mxu0 0.0
    %932 = vmatpush1.msra.mxu0 0.0
    %933 = vmatprep.subr.mxu0 0.0
    %934 = vmatpush1.msra.mxu0 0.0
    %935 = vmatprep.subr.mxu0 0.0
    %936 = vmatpush1.msra.mxu0 0.0
    %937 = vmatprep.subr.mxu0 0.0
    %938 = vmatpush1.msra.mxu0 0.0
    %939 = vmatprep.subr.mxu0 0.0
    %940 = vmatpush1.msra.mxu0 0.0
    %941 = vmatprep.subr.mxu0 0.0
    %942 = vmatpush1.msra.mxu0 0.0
    %943 = vmatprep.subr.mxu0 0.0
    %944 = vmatpush1.msra.mxu0 0.0
    %945 = vmatprep.subr.mxu0 0.0
    %946 = vmatpush1.msra.mxu0 0.0
    %947 = vmatprep.subr.mxu0 0.0
    %948 = vmatpush1.msra.mxu0 0.0
    %949 = vmatprep.subr.mxu0 0.0
    %950 = vmatpush1.msra.mxu0 0.0
    %951 = vmatprep.subr.mxu0 0.0
    %952 = vmatpush1.msra.mxu0 0.0
    %953 = vmatprep.subr.mxu0 0.0
    %954 = vmatpush1.msra.mxu0 0.0
    %955 = vmatprep.subr.mxu0 0.0
    %956 = vmatpush1.msra.mxu0 0.0
    %957 = vmatprep.subr.mxu0 0.0
    %958 = vmatpush1.msra.mxu0 0.0
    %959 = vmatprep.subr.mxu0 0.0
    %960 = vmatpush1.msra.mxu0 0.0
    %961 = vmatprep.mubr.f32.mxu0 0.0
    %962 = vmatmul.mubr.f32.gmra.mrb[0].mxu0 %v895
    %v963 = vpop.f32.mrb[0].mxu0
    %v964 = vadd.f32 0.0, %v963
    %v965 = vpop.f32.mrb[0].mxu0
    %966 = vdwg.mxu0
    %v968 = vrot.slane %v964, 4
    %v970 = vadd.f32 %v242, %v968
    %v971 = vxor.u32 %v970, 2147483648
    %v972 = vmul.f32 %v971, 1.442695
    %v973 = vpow.pop %v972
    %v974 = vadd.f32 %v973, 1.0
    %v975 = vrcp.pop %v974
    %v976 = vmul.f32 1.0, %v975
    %v977 = vadd.f32 %v964, %v331
    %v979 = vrot.slane %v977, 4
    %980 = vrot.lane.b32.xlu0 %v979, 64
    %v981 = vpop.permute.xlu0 %980
    %v983 = vmul.f32 %v976, %v981
    %985 = vrot.lane.b32.xlu0 %v983, 64
    %v986 = vpop.permute.xlu0 %985
    %v988 = vadd.f32 %v242, %v986
    %v989 = vtanh.pop %v988
    %v990 = vsub.f32 1.0, %v976
    %992 = vrot.lane.b32.xlu0 %v989, 96
    %v993 = vpop.permute.xlu0 %992
    %v995 = vmul.f32 %v990, %v993
    %v996 = vrot.slane %v890, 6
    %v998 = vmul.f32 %v976, %v996
    %v999 = vadd.f32 %v995, %v998
    %v1001 = vrot.slane %v999, 4
    %1002 = vrot.lane.b32.xlu0 %v1001, 96
    %v1003 = vpop.permute.xlu0 %1002
    %v1004 = vsel %vm163, %v1003, 0
    %1006 = vmatprep.subr.mxu0 0.0
    %1007 = vmatpush1.msra.mxu0 %v147
    %1008 = vmatprep.subr.mxu0 0.0
    %1009 = vmatpush1.msra.mxu0 %v148
    %1010 = vmatprep.subr.mxu0 0.0
    %1011 = vmatpush1.msra.mxu0 %v149
    %1012 = vmatprep.subr.mxu0 0.0
    %1013 = vmatpush1.msra.mxu0 %v150
    %1014 = vmatprep.subr.mxu0 0.0
    %1015 = vmatpush1.msra.mxu0 0.0
    %1016 = vmatprep.subr.mxu0 0.0
    %1017 = vmatpush1.msra.mxu0 0.0
    %1018 = vmatprep.subr.mxu0 0.0
    %1019 = vmatpush1.msra.mxu0 0.0
    %1020 = vmatprep.subr.mxu0 0.0
    %1021 = vmatpush1.msra.mxu0 0.0
    %1022 = vmatprep.subr.mxu0 0.0
    %1023 = vmatpush1.msra.mxu0 0.0
    %1024 = vmatprep.subr.mxu0 0.0
    %1025 = vmatpush1.msra.mxu0 0.0
    %1026 = vmatprep.subr.mxu0 0.0
    %1027 = vmatpush1.msra.mxu0 0.0
    %1028 = vmatprep.subr.mxu0 0.0
    %1029 = vmatpush1.msra.mxu0 0.0
    %1030 = vmatprep.subr.mxu0 0.0
    %1031 = vmatpush1.msra.mxu0 0.0
    %1032 = vmatprep.subr.mxu0 0.0
    %1033 = vmatpush1.msra.mxu0 0.0
    %1034 = vmatprep.subr.mxu0 0.0
    %1035 = vmatpush1.msra.mxu0 0.0
    %1036 = vmatprep.subr.mxu0 0.0
    %1037 = vmatpush1.msra.mxu0 0.0
    %1038 = vmatprep.subr.mxu0 0.0
    %1039 = vmatpush1.msra.mxu0 0.0
    %1040 = vmatprep.subr.mxu0 0.0
    %1041 = vmatpush1.msra.mxu0 0.0
    %1042 = vmatprep.subr.mxu0 0.0
    %1043 = vmatpush1.msra.mxu0 0.0
    %1044 = vmatprep.subr.mxu0 0.0
    %1045 = vmatpush1.msra.mxu0 0.0
    %1046 = vmatprep.subr.mxu0 0.0
    %1047 = vmatpush1.msra.mxu0 0.0
    %1048 = vmatprep.subr.mxu0 0.0
    %1049 = vmatpush1.msra.mxu0 0.0
    %1050 = vmatprep.subr.mxu0 0.0
    %1051 = vmatpush1.msra.mxu0 0.0
    %1052 = vmatprep.subr.mxu0 0.0
    %1053 = vmatpush1.msra.mxu0 0.0
    %1054 = vmatprep.subr.mxu0 0.0
    %1055 = vmatpush1.msra.mxu0 0.0
    %1056 = vmatprep.subr.mxu0 0.0
    %1057 = vmatpush1.msra.mxu0 0.0
    %1058 = vmatprep.subr.mxu0 0.0
    %1059 = vmatpush1.msra.mxu0 0.0
    %1060 = vmatprep.subr.mxu0 0.0
    %1061 = vmatpush1.msra.mxu0 0.0
    %1062 = vmatprep.subr.mxu0 0.0
    %1063 = vmatpush1.msra.mxu0 0.0
    %1064 = vmatprep.subr.mxu0 0.0
    %1065 = vmatpush1.msra.mxu0 0.0
    %1066 = vmatprep.subr.mxu0 0.0
    %1067 = vmatpush1.msra.mxu0 0.0
    %1068 = vmatprep.subr.mxu0 0.0
    %1069 = vmatpush1.msra.mxu0 0.0
    %1070 = vmatprep.mubr.f32.mxu0 0.0
    %1071 = vmatmul.mubr.f32.gmra.mrb[0].mxu0 %v1004
    %v1072 = vpop.f32.mrb[0].mxu0
    %v1073 = vadd.f32 0.0, %v1072
    %v1074 = vpop.f32.mrb[0].mxu0
    %1075 = vdwg.mxu0
    %v1077 = vrot.slane %v1073, 2
    %v1079 = vadd.f32 %v242, %v1077
    %v1080 = vxor.u32 %v1079, 2147483648
    %v1081 = vmul.f32 %v1080, 1.442695
    %v1082 = vpow.pop %v1081
    %v1083 = vadd.f32 %v1082, 1.0
    %v1084 = vrcp.pop %v1083
    %v1085 = vmul.f32 1.0, %v1084
    %v1086 = vadd.f32 %v1073, %v331
    %v1088 = vrot.slane %v1086, 2
    %1089 = vrot.lane.b32.xlu0 %v1088, 64
    %v1090 = vpop.permute.xlu0 %1089
    %v1092 = vmul.f32 %v1085, %v1090
    %1094 = vrot.lane.b32.xlu0 %v1092, 64
    %v1095 = vpop.permute.xlu0 %1094
    %v1097 = vadd.f32 %v242, %v1095
    %v1098 = vtanh.pop %v1097
    %v1099 = vsub.f32 1.0, %v1085
    %1101 = vrot.lane.b32.xlu0 %v1098, 96
    %v1102 = vpop.permute.xlu0 %1101
    %v1104 = vmul.f32 %v1099, %v1102
    %v1105 = vrot.slane %v999, 6
    %v1107 = vmul.f32 %v1085, %v1105
    %v1108 = vadd.f32 %v1104, %v1107
    %vm1109 = vcmask 1041408
    %v1110 = vsel %vm1109, %v352, %v460
    %vm1111 = vcmask 1043456
    %v1112 = vsel %vm1111, %v1110, %v569
    %vm1113 = vcmask 1045504
    %v1114 = vsel %vm1113, %v1112, %v678
    %v1115 = vsel %vm1109, %v782, %v890
    %v1116 = vsel %vm1111, %v1115, %v999
    %v1117 = vsel %vm1113, %v1116, %v1108
    %v1118 = vld [vmem:[%s7] sm:$0xff]
    %v1119 = vld [vmem:[%s7 + $0x8] sm:$0xff]
    %v1120 = vld [vmem:[%s7 + $0x10] sm:$0xff]
    %v1121 = vld [vmem:[%s7 + $0x18] sm:$0xff]
    %v1122 = vld [vmem:[%s9] sm:$0x1]
    %v1123 = vld [vmem:[%s6] sm:$0xff]
    %v1124 = vld [vmem:[%s6 + $0x8] sm:$0xff]
    %v1125 = vld [vmem:[%s6 + $0x10] sm:$0xff]
    %v1126 = vld [vmem:[%s6 + $0x18] sm:$0xff]
    %v1127 = vld [vmem:[%s8] sm:$0x1]
    %v1129 = vlaneseq
    %v1130 = vshrl.u32 %v1129, 7
    %v1131 = vsub.s32 0, %v1130
    %v1132 = vrot.slane %v1127, %v1131
    %1136 = vrot.lane.b32.xlu0 %v1114, 96
    %v1137 = vpop.permute.xlu0 %1136
    %1138 = vrot.lane.b32.xlu0 %v1117, 96
    %v1139 = vpop.permute.xlu0 %1138
    %v1140 = vsel %vm163, %v1137, 0
    %v1142 = vsel %vm163, %v1139, 0
    %1144 = vmatprep.subr.mxu0 0.0
    %1145 = vmatpush1.msra.mxu0 %v1123
    %1146 = vmatprep.subr.mxu0 0.0
    %1147 = vmatpush1.msra.mxu0 %v1124
    %1148 = vmatprep.subr.mxu0 0.0
    %1149 = vmatpush1.msra.mxu0 %v1125
    %1150 = vmatprep.subr.mxu0 0.0
    %1151 = vmatpush1.msra.mxu0 %v1126
    %1152 = vmatprep.subr.mxu0 0.0
    %1153 = vmatpush1.msra.mxu0 0.0
    %1154 = vmatprep.subr.mxu0 0.0
    %1155 = vmatpush1.msra.mxu0 0.0
    %1156 = vmatprep.subr.mxu0 0.0
    %1157 = vmatpush1.msra.mxu0 0.0
    %1158 = vmatprep.subr.mxu0 0.0
    %1159 = vmatpush1.msra.mxu0 0.0
    %1160 = vmatprep.subr.mxu0 0.0
    %1161 = vmatpush1.msra.mxu0 0.0
    %1162 = vmatprep.subr.mxu0 0.0
    %1163 = vmatpush1.msra.mxu0 0.0
    %1164 = vmatprep.subr.mxu0 0.0
    %1165 = vmatpush1.msra.mxu0 0.0
    %1166 = vmatprep.subr.mxu0 0.0
    %1167 = vmatpush1.msra.mxu0 0.0
    %1168 = vmatprep.subr.mxu0 0.0
    %1169 = vmatpush1.msra.mxu0 0.0
    %1170 = vmatprep.subr.mxu0 0.0
    %1171 = vmatpush1.msra.mxu0 0.0
    %1172 = vmatprep.subr.mxu0 0.0
    %1173 = vmatpush1.msra.mxu0 0.0
    %1174 = vmatprep.subr.mxu0 0.0
    %1175 = vmatpush1.msra.mxu0 0.0
    %1176 = vmatprep.subr.mxu0 0.0
    %1177 = vmatpush1.msra.mxu0 0.0
    %1178 = vmatprep.subr.mxu0 0.0
    %1179 = vmatpush1.msra.mxu0 0.0
    %1180 = vmatprep.subr.mxu0 0.0
    %1181 = vmatpush1.msra.mxu0 0.0
    %1182 = vmatprep.subr.mxu0 0.0
    %1183 = vmatpush1.msra.mxu0 0.0
    %1184 = vmatprep.subr.mxu0 0.0
    %1185 = vmatpush1.msra.mxu0 0.0
    %1186 = vmatprep.subr.mxu0 0.0
    %1187 = vmatpush1.msra.mxu0 0.0
    %1188 = vmatprep.subr.mxu0 0.0
    %1189 = vmatpush1.msra.mxu0 0.0
    %1190 = vmatprep.subr.mxu0 0.0
    %1191 = vmatpush1.msra.mxu0 0.0
    %1192 = vmatprep.subr.mxu0 0.0
    %1193 = vmatpush1.msra.mxu0 0.0
    %1194 = vmatprep.subr.mxu0 0.0
    %1195 = vmatpush1.msra.mxu0 0.0
    %1196 = vmatprep.subr.mxu0 0.0
    %1197 = vmatpush1.msra.mxu0 0.0
    %1198 = vmatprep.subr.mxu0 0.0
    %1199 = vmatpush1.msra.mxu0 0.0
    %1200 = vmatprep.subr.mxu0 0.0
    %1201 = vmatpush1.msra.mxu0 0.0
    %1202 = vmatprep.subr.mxu0 0.0
    %1203 = vmatpush1.msra.mxu0 0.0
    %1204 = vmatprep.subr.mxu0 0.0
    %1205 = vmatpush1.msra.mxu0 0.0
    %1206 = vmatprep.subr.mxu0 0.0
    %1207 = vmatpush1.msra.mxu0 0.0
    %1208 = vmatprep.mubr.f32.mxu0 0.0
    %1209 = vmatmul.mubr.f32.gmra.mrb[0].mxu0 %v1140
    %v1210 = vpop.f32.mrb[0].mxu0
    %v1211 = vadd.f32 %v1132, %v1210
    %v1212 = vpop.f32.mrb[0].mxu0
    %1213 = vmatprep.mubr.f32.mxu0 0.0
    %1214 = vmatmul.mubr.f32.gmra.mrb[0].mxu0 %v1142
    %v1215 = vpop.f32.mrb[0].mxu0
    %v1216 = vadd.f32 %v1132, %v1215
    %v1217 = vpop.f32.mrb[0].mxu0
    %1218 = vdwg.mxu0
    %1219 = vmatprep.subr.mxu0 0.0
    %1220 = vmatpush1.msra.mxu0 %v1118
    %1221 = vmatprep.subr.mxu0 0.0
    %1222 = vmatpush1.msra.mxu0 %v1119
    %1223 = vmatprep.subr.mxu0 0.0
    %1224 = vmatpush1.msra.mxu0 %v1120
    %1225 = vmatprep.subr.mxu0 0.0
    %1226 = vmatpush1.msra.mxu0 %v1121
    %1227 = vmatprep.subr.mxu0 0.0
    %1228 = vmatpush1.msra.mxu0 0.0
    %1229 = vmatprep.subr.mxu0 0.0
    %1230 = vmatpush1.msra.mxu0 0.0
    %1231 = vmatprep.subr.mxu0 0.0
    %1232 = vmatpush1.msra.mxu0 0.0
    %1233 = vmatprep.subr.mxu0 0.0
    %1234 = vmatpush1.msra.mxu0 0.0
    %1235 = vmatprep.subr.mxu0 0.0
    %1236 = vmatpush1.msra.mxu0 0.0
    %1237 = vmatprep.subr.mxu0 0.0
    %1238 = vmatpush1.msra.mxu0 0.0
    %1239 = vmatprep.subr.mxu0 0.0
    %1240 = vmatpush1.msra.mxu0 0.0
    %1241 = vmatprep.subr.mxu0 0.0
    %1242 = vmatpush1.msra.mxu0 0.0
    %1243 = vmatprep.subr.mxu0 0.0
    %1244 = vmatpush1.msra.mxu0 0.0
    %1245 = vmatprep.subr.mxu0 0.0
    %1246 = vmatpush1.msra.mxu0 0.0
    %1247 = vmatprep.subr.mxu0 0.0
    %1248 = vmatpush1.msra.mxu0 0.0
    %1249 = vmatprep.subr.mxu0 0.0
    %1250 = vmatpush1.msra.mxu0 0.0
    %1251 = vmatprep.subr.mxu0 0.0
    %1252 = vmatpush1.msra.mxu0 0.0
    %1253 = vmatprep.subr.mxu0 0.0
    %1254 = vmatpush1.msra.mxu0 0.0
    %1255 = vmatprep.subr.mxu0 0.0
    %1256 = vmatpush1.msra.mxu0 0.0
    %1257 = vmatprep.subr.mxu0 0.0
    %1258 = vmatpush1.msra.mxu0 0.0
    %1259 = vmatprep.subr.mxu0 0.0
    %1260 = vmatpush1.msra.mxu0 0.0
    %1261 = vmatprep.subr.mxu0 0.0
    %1262 = vmatpush1.msra.mxu0 0.0
    %1263 = vmatprep.subr.mxu0 0.0
    %1264 = vmatpush1.msra.mxu0 0.0
    %1265 = vmatprep.subr.mxu0 0.0
    %1266 = vmatpush1.msra.mxu0 0.0
    %1267 = vmatprep.subr.mxu0 0.0
    %1268 = vmatpush1.msra.mxu0 0.0
    %1269 = vmatprep.subr.mxu0 0.0
    %1270 = vmatpush1.msra.mxu0 0.0
    %1271 = vmatprep.subr.mxu0 0.0
    %1272 = vmatpush1.msra.mxu0 0.0
    %1273 = vmatprep.subr.mxu0 0.0
    %1274 = vmatpush1.msra.mxu0 0.0
    %1275 = vmatprep.subr.mxu0 0.0
    %1276 = vmatpush1.msra.mxu0 0.0
    %1277 = vmatprep.subr.mxu0 0.0
    %1278 = vmatpush1.msra.mxu0 0.0
    %1279 = vmatprep.subr.mxu0 0.0
    %1280 = vmatpush1.msra.mxu0 0.0
    %1281 = vmatprep.subr.mxu0 0.0
    %1282 = vmatpush1.msra.mxu0 0.0
    %1283 = vmatprep.mubr.f32.mxu0 0.0
    %1284 = vmatmul.mubr.f32.gmra.mrb[0].mxu0 %v246
    %v1285 = vpop.f32.mrb[0].mxu0
    %v1286 = vadd.f32 0.0, %v1285
    %v1287 = vpop.f32.mrb[0].mxu0
    %1288 = vdwg.mxu0
    %v1289 = vadd.f32 %v1211, %v1286
    %v1290 = vxor.u32 %v1289, 2147483648
    %v1291 = vmul.f32 %v1290, 1.442695
    %v1292 = vpow.pop %v1291
    %v1293 = vadd.f32 %v1292, 1.0
    %v1294 = vrcp.pop %v1293
    %v1295 = vmul.f32 1.0, %v1294
    %v1297 = vlaneseq
    %v1298 = vshrl.u32 %v1297, 7
    %v1299 = vsub.s32 0, %v1298
    %v1300 = vrot.slane %v1122, %v1299
    %1301 = vrot.lane.b32.xlu0 %v1300, 64
    %v1302 = vpop.permute.xlu0 %1301
    %v1304 = vadd.f32 %v1286, %v1302
    %1306 = vrot.lane.b32.xlu0 %v1304, 64
    %v1307 = vpop.permute.xlu0 %1306
    %v1309 = vmul.f32 %v1295, %v1307
    %1311 = vrot.lane.b32.xlu0 %v1309, 64
    %v1312 = vpop.permute.xlu0 %1311
    %v1314 = vadd.f32 %v1211, %v1312
    %v1315 = vtanh.pop %v1314
    %v1316 = vsub.f32 1.0, %v1295
    %1318 = vrot.lane.b32.xlu0 %v1315, 96
    %v1319 = vpop.permute.xlu0 %1318
    %v1321 = vmul.f32 %v1316, %v1319
    %v1322 = vmul.f32 %v1295, 0.0
    %v1323 = vadd.f32 %v1321, %v1322
    %1325 = vrot.lane.b32.xlu0 %v1323, 96
    %v1326 = vpop.permute.xlu0 %1325
    %v1327 = vsel %vm163, %v1326, 0
    %1329 = vmatprep.subr.mxu0 0.0
    %1330 = vmatpush1.msra.mxu0 %v1118
    %1331 = vmatprep.subr.mxu0 0.0
    %1332 = vmatpush1.msra.mxu0 %v1119
    %1333 = vmatprep.subr.mxu0 0.0
    %1334 = vmatpush1.msra.mxu0 %v1120
    %1335 = vmatprep.subr.mxu0 0.0
    %1336 = vmatpush1.msra.mxu0 %v1121
    %1337 = vmatprep.subr.mxu0 0.0
    %1338 = vmatpush1.msra.mxu0 0.0
    %1339 = vmatprep.subr.mxu0 0.0
    %1340 = vmatpush1.msra.mxu0 0.0
    %1341 = vmatprep.subr.mxu0 0.0
    %1342 = vmatpush1.msra.mxu0 0.0
    %1343 = vmatprep.subr.mxu0 0.0
    %1344 = vmatpush1.msra.mxu0 0.0
    %1345 = vmatprep.subr.mxu0 0.0
    %1346 = vmatpush1.msra.mxu0 0.0
    %1347 = vmatprep.subr.mxu0 0.0
    %1348 = vmatpush1.msra.mxu0 0.0
    %1349 = vmatprep.subr.mxu0 0.0
    %1350 = vmatpush1.msra.mxu0 0.0
    %1351 = vmatprep.subr.mxu0 0.0
    %1352 = vmatpush1.msra.mxu0 0.0
    %1353 = vmatprep.subr.mxu0 0.0
    %1354 = vmatpush1.msra.mxu0 0.0
    %1355 = vmatprep.subr.mxu0 0.0
    %1356 = vmatpush1.msra.mxu0 0.0
    %1357 = vmatprep.subr.mxu0 0.0
    %1358 = vmatpush1.msra.mxu0 0.0
    %1359 = vmatprep.subr.mxu0 0.0
    %1360 = vmatpush1.msra.mxu0 0.0
    %1361 = vmatprep.subr.mxu0 0.0
    %1362 = vmatpush1.msra.mxu0 0.0
    %1363 = vmatprep.subr.mxu0 0.0
    %1364 = vmatpush1.msra.mxu0 0.0
    %1365 = vmatprep.subr.mxu0 0.0
    %1366 = vmatpush1.msra.mxu0 0.0
    %1367 = vmatprep.subr.mxu0 0.0
    %1368 = vmatpush1.msra.mxu0 0.0
    %1369 = vmatprep.subr.mxu0 0.0
    %1370 = vmatpush1.msra.mxu0 0.0
    %1371 = vmatprep.subr.mxu0 0.0
    %1372 = vmatpush1.msra.mxu0 0.0
    %1373 = vmatprep.subr.mxu0 0.0
    %1374 = vmatpush1.msra.mxu0 0.0
    %1375 = vmatprep.subr.mxu0 0.0
    %1376 = vmatpush1.msra.mxu0 0.0
    %1377 = vmatprep.subr.mxu0 0.0
    %1378 = vmatpush1.msra.mxu0 0.0
    %1379 = vmatprep.subr.mxu0 0.0
    %1380 = vmatpush1.msra.mxu0 0.0
    %1381 = vmatprep.subr.mxu0 0.0
    %1382 = vmatpush1.msra.mxu0 0.0
    %1383 = vmatprep.subr.mxu0 0.0
    %1384 = vmatpush1.msra.mxu0 0.0
    %1385 = vmatprep.subr.mxu0 0.0
    %1386 = vmatpush1.msra.mxu0 0.0
    %1387 = vmatprep.subr.mxu0 0.0
    %1388 = vmatpush1.msra.mxu0 0.0
    %1389 = vmatprep.subr.mxu0 0.0
    %1390 = vmatpush1.msra.mxu0 0.0
    %1391 = vmatprep.subr.mxu0 0.0
    %1392 = vmatpush1.msra.mxu0 0.0
    %1393 = vmatprep.mubr.f32.mxu0 0.0
    %1394 = vmatmul.mubr.f32.gmra.mrb[0].mxu0 %v1327
    %v1395 = vpop.f32.mrb[0].mxu0
    %v1396 = vadd.f32 0.0, %v1395
    %v1397 = vpop.f32.mrb[0].mxu0
    %1398 = vdwg.mxu0
    %v1400 = vrot.slane %v1396, 6
    %v1402 = vadd.f32 %v1211, %v1400
    %v1403 = vxor.u32 %v1402, 2147483648
    %v1404 = vmul.f32 %v1403, 1.442695
    %v1405 = vpow.pop %v1404
    %v1406 = vadd.f32 %v1405, 1.0
    %v1407 = vrcp.pop %v1406
    %v1408 = vmul.f32 1.0, %v1407
    %v1409 = vadd.f32 %v1396, %v1302
    %v1411 = vrot.slane %v1409, 6
    %1412 = vrot.lane.b32.xlu0 %v1411, 64
    %v1413 = vpop.permute.xlu0 %1412
    %v1415 = vmul.f32 %v1408, %v1413
    %1417 = vrot.lane.b32.xlu0 %v1415, 64
    %v1418 = vpop.permute.xlu0 %1417
    %v1420 = vadd.f32 %v1211, %v1418
    %v1421 = vtanh.pop %v1420
    %v1422 = vsub.f32 1.0, %v1408
    %1424 = vrot.lane.b32.xlu0 %v1421, 96
    %v1425 = vpop.permute.xlu0 %1424
    %v1427 = vmul.f32 %v1422, %v1425
    %v1428 = vrot.slane %v1323, 6
    %v1430 = vmul.f32 %v1408, %v1428
    %v1431 = vadd.f32 %v1427, %v1430
    %v1433 = vrot.slane %v1431, 2
    %1434 = vrot.lane.b32.xlu0 %v1433, 96
    %v1435 = vpop.permute.xlu0 %1434
    %v1436 = vsel %vm163, %v1435, 0
    %1438 = vmatprep.subr.mxu0 0.0
    %1439 = vmatpush1.msra.mxu0 %v1118
    %1440 = vmatprep.subr.mxu0 0.0
    %1441 = vmatpush1.msra.mxu0 %v1119
    %1442 = vmatprep.subr.mxu0 0.0
    %1443 = vmatpush1.msra.mxu0 %v1120
    %1444 = vmatprep.subr.mxu0 0.0
    %1445 = vmatpush1.msra.mxu0 %v1121
    %1446 = vmatprep.subr.mxu0 0.0
    %1447 = vmatpush1.msra.mxu0 0.0
    %1448 = vmatprep.subr.mxu0 0.0
    %1449 = vmatpush1.msra.mxu0 0.0
    %1450 = vmatprep.subr.mxu0 0.0
    %1451 = vmatpush1.msra.mxu0 0.0
    %1452 = vmatprep.subr.mxu0 0.0
    %1453 = vmatpush1.msra.mxu0 0.0
    %1454 = vmatprep.subr.mxu0 0.0
    %1455 = vmatpush1.msra.mxu0 0.0
    %1456 = vmatprep.subr.mxu0 0.0
    %1457 = vmatpush1.msra.mxu0 0.0
    %1458 = vmatprep.subr.mxu0 0.0
    %1459 = vmatpush1.msra.mxu0 0.0
    %1460 = vmatprep.subr.mxu0 0.0
    %1461 = vmatpush1.msra.mxu0 0.0
    %1462 = vmatprep.subr.mxu0 0.0
    %1463 = vmatpush1.msra.mxu0 0.0
    %1464 = vmatprep.subr.mxu0 0.0
    %1465 = vmatpush1.msra.mxu0 0.0
    %1466 = vmatprep.subr.mxu0 0.0
    %1467 = vmatpush1.msra.mxu0 0.0
    %1468 = vmatprep.subr.mxu0 0.0
    %1469 = vmatpush1.msra.mxu0 0.0
    %1470 = vmatprep.subr.mxu0 0.0
    %1471 = vmatpush1.msra.mxu0 0.0
    %1472 = vmatprep.subr.mxu0 0.0
    %1473 = vmatpush1.msra.mxu0 0.0
    %1474 = vmatprep.subr.mxu0 0.0
    %1475 = vmatpush1.msra.mxu0 0.0
    %1476 = vmatprep.subr.mxu0 0.0
    %1477 = vmatpush1.msra.mxu0 0.0
    %1478 = vmatprep.subr.mxu0 0.0
    %1479 = vmatpush1.msra.mxu0 0.0
    %1480 = vmatprep.subr.mxu0 0.0
    %1481 = vmatpush1.msra.mxu0 0.0
    %1482 = vmatprep.subr.mxu0 0.0
    %1483 = vmatpush1.msra.mxu0 0.0
    %1484 = vmatprep.subr.mxu0 0.0
    %1485 = vmatpush1.msra.mxu0 0.0
    %1486 = vmatprep.subr.mxu0 0.0
    %1487 = vmatpush1.msra.mxu0 0.0
    %1488 = vmatprep.subr.mxu0 0.0
    %1489 = vmatpush1.msra.mxu0 0.0
    %1490 = vmatprep.subr.mxu0 0.0
    %1491 = vmatpush1.msra.mxu0 0.0
    %1492 = vmatprep.subr.mxu0 0.0
    %1493 = vmatpush1.msra.mxu0 0.0
    %1494 = vmatprep.subr.mxu0 0.0
    %1495 = vmatpush1.msra.mxu0 0.0
    %1496 = vmatprep.subr.mxu0 0.0
    %1497 = vmatpush1.msra.mxu0 0.0
    %1498 = vmatprep.subr.mxu0 0.0
    %1499 = vmatpush1.msra.mxu0 0.0
    %1500 = vmatprep.subr.mxu0 0.0
    %1501 = vmatpush1.msra.mxu0 0.0
    %1502 = vmatprep.mubr.f32.mxu0 0.0
    %1503 = vmatmul.mubr.f32.gmra.mrb[0].mxu0 %v1436
    %v1504 = vpop.f32.mrb[0].mxu0
    %v1505 = vadd.f32 0.0, %v1504
    %v1506 = vpop.f32.mrb[0].mxu0
    %1507 = vdwg.mxu0
    %v1509 = vrot.slane %v1505, 4
    %v1511 = vadd.f32 %v1211, %v1509
    %v1512 = vxor.u32 %v1511, 2147483648
    %v1513 = vmul.f32 %v1512, 1.442695
    %v1514 = vpow.pop %v1513
    %v1515 = vadd.f32 %v1514, 1.0
    %v1516 = vrcp.pop %v1515
    %v1517 = vmul.f32 1.0, %v1516
    %v1518 = vadd.f32 %v1505, %v1302
    %v1520 = vrot.slane %v1518, 4
    %1521 = vrot.lane.b32.xlu0 %v1520, 64
    %v1522 = vpop.permute.xlu0 %1521
    %v1524 = vmul.f32 %v1517, %v1522
    %1526 = vrot.lane.b32.xlu0 %v1524, 64
    %v1527 = vpop.permute.xlu0 %1526
    %v1529 = vadd.f32 %v1211, %v1527
    %v1530 = vtanh.pop %v1529
    %v1531 = vsub.f32 1.0, %v1517
    %1533 = vrot.lane.b32.xlu0 %v1530, 96
    %v1534 = vpop.permute.xlu0 %1533
    %v1536 = vmul.f32 %v1531, %v1534
    %v1537 = vrot.slane %v1431, 6
    %v1539 = vmul.f32 %v1517, %v1537
    %v1540 = vadd.f32 %v1536, %v1539
    %v1542 = vrot.slane %v1540, 4
    %1543 = vrot.lane.b32.xlu0 %v1542, 96
    %v1544 = vpop.permute.xlu0 %1543
    %v1545 = vsel %vm163, %v1544, 0
    %1547 = vmatprep.subr.mxu0 0.0
    %1548 = vmatpush1.msra.mxu0 %v1118
    %1549 = vmatprep.subr.mxu0 0.0
    %1550 = vmatpush1.msra.mxu0 %v1119
    %1551 = vmatprep.subr.mxu0 0.0
    %1552 = vmatpush1.msra.mxu0 %v1120
    %1553 = vmatprep.subr.mxu0 0.0
    %1554 = vmatpush1.msra.mxu0 %v1121
    %1555 = vmatprep.subr.mxu0 0.0
    %1556 = vmatpush1.msra.mxu0 0.0
    %1557 = vmatprep.subr.mxu0 0.0
    %1558 = vmatpush1.msra.mxu0 0.0
    %1559 = vmatprep.subr.mxu0 0.0
    %1560 = vmatpush1.msra.mxu0 0.0
    %1561 = vmatprep.subr.mxu0 0.0
    %1562 = vmatpush1.msra.mxu0 0.0
    %1563 = vmatprep.subr.mxu0 0.0
    %1564 = vmatpush1.msra.mxu0 0.0
    %1565 = vmatprep.subr.mxu0 0.0
    %1566 = vmatpush1.msra.mxu0 0.0
    %1567 = vmatprep.subr.mxu0 0.0
    %1568 = vmatpush1.msra.mxu0 0.0
    %1569 = vmatprep.subr.mxu0 0.0
    %1570 = vmatpush1.msra.mxu0 0.0
    %1571 = vmatprep.subr.mxu0 0.0
    %1572 = vmatpush1.msra.mxu0 0.0
    %1573 = vmatprep.subr.mxu0 0.0
    %1574 = vmatpush1.msra.mxu0 0.0
    %1575 = vmatprep.subr.mxu0 0.0
    %1576 = vmatpush1.msra.mxu0 0.0
    %1577 = vmatprep.subr.mxu0 0.0
    %1578 = vmatpush1.msra.mxu0 0.0
    %1579 = vmatprep.subr.mxu0 0.0
    %1580 = vmatpush1.msra.mxu0 0.0
    %1581 = vmatprep.subr.mxu0 0.0
    %1582 = vmatpush1.msra.mxu0 0.0
    %1583 = vmatprep.subr.mxu0 0.0
    %1584 = vmatpush1.msra.mxu0 0.0
    %1585 = vmatprep.subr.mxu0 0.0
    %1586 = vmatpush1.msra.mxu0 0.0
    %1587 = vmatprep.subr.mxu0 0.0
    %1588 = vmatpush1.msra.mxu0 0.0
    %1589 = vmatprep.subr.mxu0 0.0
    %1590 = vmatpush1.msra.mxu0 0.0
    %1591 = vmatprep.subr.mxu0 0.0
    %1592 = vmatpush1.msra.mxu0 0.0
    %1593 = vmatprep.subr.mxu0 0.0
    %1594 = vmatpush1.msra.mxu0 0.0
    %1595 = vmatprep.subr.mxu0 0.0
    %1596 = vmatpush1.msra.mxu0 0.0
    %1597 = vmatprep.subr.mxu0 0.0
    %1598 = vmatpush1.msra.mxu0 0.0
    %1599 = vmatprep.subr.mxu0 0.0
    %1600 = vmatpush1.msra.mxu0 0.0
    %1601 = vmatprep.subr.mxu0 0.0
    %1602 = vmatpush1.msra.mxu0 0.0
    %1603 = vmatprep.subr.mxu0 0.0
    %1604 = vmatpush1.msra.mxu0 0.0
    %1605 = vmatprep.subr.mxu0 0.0
    %1606 = vmatpush1.msra.mxu0 0.0
    %1607 = vmatprep.subr.mxu0 0.0
    %1608 = vmatpush1.msra.mxu0 0.0
    %1609 = vmatprep.subr.mxu0 0.0
    %1610 = vmatpush1.msra.mxu0 0.0
    %1611 = vmatprep.mubr.f32.mxu0 0.0
    %1612 = vmatmul.mubr.f32.gmra.mrb[0].mxu0 %v1545
    %v1613 = vpop.f32.mrb[0].mxu0
    %v1614 = vadd.f32 0.0, %v1613
    %v1615 = vpop.f32.mrb[0].mxu0
    %1616 = vdwg.mxu0
    %v1618 = vrot.slane %v1614, 2
    %v1620 = vadd.f32 %v1211, %v1618
    %v1621 = vxor.u32 %v1620, 2147483648
    %v1622 = vmul.f32 %v1621, 1.442695
    %v1623 = vpow.pop %v1622
    %v1624 = vadd.f32 %v1623, 1.0
    %v1625 = vrcp.pop %v1624
    %v1626 = vmul.f32 1.0, %v1625
    %v1627 = vadd.f32 %v1614, %v1302
    %v1629 = vrot.slane %v1627, 2
    %1630 = vrot.lane.b32.xlu0 %v1629, 64
    %v1631 = vpop.permute.xlu0 %1630
    %v1633 = vmul.f32 %v1626, %v1631
    %1635 = vrot.lane.b32.xlu0 %v1633, 64
    %v1636 = vpop.permute.xlu0 %1635
    %v1638 = vadd.f32 %v1211, %v1636
    %v1639 = vtanh.pop %v1638
    %v1640 = vsub.f32 1.0, %v1626
    %1642 = vrot.lane.b32.xlu0 %v1639, 96
    %v1643 = vpop.permute.xlu0 %1642
    %v1645 = vmul.f32 %v1640, %v1643
    %v1646 = vrot.slane %v1540, 6
    %v1648 = vmul.f32 %v1626, %v1646
    %v1649 = vadd.f32 %v1645, %v1648
    %v1651 = vrot.slane %v1649, 6
    %1652 = vrot.lane.b32.xlu0 %v1651, 96
    %v1653 = vpop.permute.xlu0 %1652
    %v1654 = vsel %vm163, %v1653, 0
    %1656 = vmatprep.subr.mxu0 0.0
    %1657 = vmatpush1.msra.mxu0 %v1118
    %1658 = vmatprep.subr.mxu0 0.0
    %1659 = vmatpush1.msra.mxu0 %v1119
    %1660 = vmatprep.subr.mxu0 0.0
    %1661 = vmatpush1.msra.mxu0 %v1120
    %1662 = vmatprep.subr.mxu0 0.0
    %1663 = vmatpush1.msra.mxu0 %v1121
    %1664 = vmatprep.subr.mxu0 0.0
    %1665 = vmatpush1.msra.mxu0 0.0
    %1666 = vmatprep.subr.mxu0 0.0
    %1667 = vmatpush1.msra.mxu0 0.0
    %1668 = vmatprep.subr.mxu0 0.0
    %1669 = vmatpush1.msra.mxu0 0.0
    %1670 = vmatprep.subr.mxu0 0.0
    %1671 = vmatpush1.msra.mxu0 0.0
    %1672 = vmatprep.subr.mxu0 0.0
    %1673 = vmatpush1.msra.mxu0 0.0
    %1674 = vmatprep.subr.mxu0 0.0
    %1675 = vmatpush1.msra.mxu0 0.0
    %1676 = vmatprep.subr.mxu0 0.0
    %1677 = vmatpush1.msra.mxu0 0.0
    %1678 = vmatprep.subr.mxu0 0.0
    %1679 = vmatpush1.msra.mxu0 0.0
    %1680 = vmatprep.subr.mxu0 0.0
    %1681 = vmatpush1.msra.mxu0 0.0
    %1682 = vmatprep.subr.mxu0 0.0
    %1683 = vmatpush1.msra.mxu0 0.0
    %1684 = vmatprep.subr.mxu0 0.0
    %1685 = vmatpush1.msra.mxu0 0.0
    %1686 = vmatprep.subr.mxu0 0.0
    %1687 = vmatpush1.msra.mxu0 0.0
    %1688 = vmatprep.subr.mxu0 0.0
    %1689 = vmatpush1.msra.mxu0 0.0
    %1690 = vmatprep.subr.mxu0 0.0
    %1691 = vmatpush1.msra.mxu0 0.0
    %1692 = vmatprep.subr.mxu0 0.0
    %1693 = vmatpush1.msra.mxu0 0.0
    %1694 = vmatprep.subr.mxu0 0.0
    %1695 = vmatpush1.msra.mxu0 0.0
    %1696 = vmatprep.subr.mxu0 0.0
    %1697 = vmatpush1.msra.mxu0 0.0
    %1698 = vmatprep.subr.mxu0 0.0
    %1699 = vmatpush1.msra.mxu0 0.0
    %1700 = vmatprep.subr.mxu0 0.0
    %1701 = vmatpush1.msra.mxu0 0.0
    %1702 = vmatprep.subr.mxu0 0.0
    %1703 = vmatpush1.msra.mxu0 0.0
    %1704 = vmatprep.subr.mxu0 0.0
    %1705 = vmatpush1.msra.mxu0 0.0
    %1706 = vmatprep.subr.mxu0 0.0
    %1707 = vmatpush1.msra.mxu0 0.0
    %1708 = vmatprep.subr.mxu0 0.0
    %1709 = vmatpush1.msra.mxu0 0.0
    %1710 = vmatprep.subr.mxu0 0.0
    %1711 = vmatpush1.msra.mxu0 0.0
    %1712 = vmatprep.subr.mxu0 0.0
    %1713 = vmatpush1.msra.mxu0 0.0
    %1714 = vmatprep.subr.mxu0 0.0
    %1715 = vmatpush1.msra.mxu0 0.0
    %1716 = vmatprep.subr.mxu0 0.0
    %1717 = vmatpush1.msra.mxu0 0.0
    %1718 = vmatprep.subr.mxu0 0.0
    %1719 = vmatpush1.msra.mxu0 0.0
    %1720 = vmatprep.mubr.f32.mxu0 0.0
    %1721 = vmatmul.mubr.f32.gmra.mrb[0].mxu0 %v1654
    %v1722 = vpop.f32.mrb[0].mxu0
    %v1723 = vadd.f32 0.0, %v1722
    %v1724 = vpop.f32.mrb[0].mxu0
    %1725 = vdwg.mxu0
    %v1726 = vadd.f32 %v1216, %v1723
    %v1727 = vxor.u32 %v1726, 2147483648
    %v1728 = vmul.f32 %v1727, 1.442695
    %v1729 = vpow.pop %v1728
    %v1730 = vadd.f32 %v1729, 1.0
    %v1731 = vrcp.pop %v1730
    %v1732 = vmul.f32 1.0, %v1731
    %v1733 = vadd.f32 %v1723, %v1302
    %1735 = vrot.lane.b32.xlu0 %v1733, 64
    %v1736 = vpop.permute.xlu0 %1735
    %v1738 = vmul.f32 %v1732, %v1736
    %1740 = vrot.lane.b32.xlu0 %v1738, 64
    %v1741 = vpop.permute.xlu0 %1740
    %v1743 = vadd.f32 %v1216, %v1741
    %v1744 = vtanh.pop %v1743
    %v1745 = vsub.f32 1.0, %v1732
    %1747 = vrot.lane.b32.xlu0 %v1744, 96
    %v1748 = vpop.permute.xlu0 %1747
    %v1750 = vmul.f32 %v1745, %v1748
    %v1752 = vmul.f32 %v1732, %v1651
    %v1753 = vadd.f32 %v1750, %v1752
    %1755 = vrot.lane.b32.xlu0 %v1753, 96
    %v1756 = vpop.permute.xlu0 %1755
    %v1757 = vsel %vm163, %v1756, 0
    %1759 = vmatprep.subr.mxu0 0.0
    %1760 = vmatpush1.msra.mxu0 %v1118
    %1761 = vmatprep.subr.mxu0 0.0
    %1762 = vmatpush1.msra.mxu0 %v1119
    %1763 = vmatprep.subr.mxu0 0.0
    %1764 = vmatpush1.msra.mxu0 %v1120
    %1765 = vmatprep.subr.mxu0 0.0
    %1766 = vmatpush1.msra.mxu0 %v1121
    %1767 = vmatprep.subr.mxu0 0.0
    %1768 = vmatpush1.msra.mxu0 0.0
    %1769 = vmatprep.subr.mxu0 0.0
    %1770 = vmatpush1.msra.mxu0 0.0
    %1771 = vmatprep.subr.mxu0 0.0
    %1772 = vmatpush1.msra.mxu0 0.0
    %1773 = vmatprep.subr.mxu0 0.0
    %1774 = vmatpush1.msra.mxu0 0.0
    %1775 = vmatprep.subr.mxu0 0.0
    %1776 = vmatpush1.msra.mxu0 0.0
    %1777 = vmatprep.subr.mxu0 0.0
    %1778 = vmatpush1.msra.mxu0 0.0
    %1779 = vmatprep.subr.mxu0 0.0
    %1780 = vmatpush1.msra.mxu0 0.0
    %1781 = vmatprep.subr.mxu0 0.0
    %1782 = vmatpush1.msra.mxu0 0.0
    %1783 = vmatprep.subr.mxu0 0.0
    %1784 = vmatpush1.msra.mxu0 0.0
    %1785 = vmatprep.subr.mxu0 0.0
    %1786 = vmatpush1.msra.mxu0 0.0
    %1787 = vmatprep.subr.mxu0 0.0
    %1788 = vmatpush1.msra.mxu0 0.0
    %1789 = vmatprep.subr.mxu0 0.0
    %1790 = vmatpush1.msra.mxu0 0.0
    %1791 = vmatprep.subr.mxu0 0.0
    %1792 = vmatpush1.msra.mxu0 0.0
    %1793 = vmatprep.subr.mxu0 0.0
    %1794 = vmatpush1.msra.mxu0 0.0
    %1795 = vmatprep.subr.mxu0 0.0
    %1796 = vmatpush1.msra.mxu0 0.0
    %1797 = vmatprep.subr.mxu0 0.0
    %1798 = vmatpush1.msra.mxu0 0.0
    %1799 = vmatprep.subr.mxu0 0.0
    %1800 = vmatpush1.msra.mxu0 0.0
    %1801 = vmatprep.subr.mxu0 0.0
    %1802 = vmatpush1.msra.mxu0 0.0
    %1803 = vmatprep.subr.mxu0 0.0
    %1804 = vmatpush1.msra.mxu0 0.0
    %1805 = vmatprep.subr.mxu0 0.0
    %1806 = vmatpush1.msra.mxu0 0.0
    %1807 = vmatprep.subr.mxu0 0.0
    %1808 = vmatpush1.msra.mxu0 0.0
    %1809 = vmatprep.subr.mxu0 0.0
    %1810 = vmatpush1.msra.mxu0 0.0
    %1811 = vmatprep.subr.mxu0 0.0
    %1812 = vmatpush1.msra.mxu0 0.0
    %1813 = vmatprep.subr.mxu0 0.0
    %1814 = vmatpush1.msra.mxu0 0.0
    %1815 = vmatprep.subr.mxu0 0.0
    %1816 = vmatpush1.msra.mxu0 0.0
    %1817 = vmatprep.subr.mxu0 0.0
    %1818 = vmatpush1.msra.mxu0 0.0
    %1819 = vmatprep.subr.mxu0 0.0
    %1820 = vmatpush1.msra.mxu0 0.0
    %1821 = vmatprep.subr.mxu0 0.0
    %1822 = vmatpush1.msra.mxu0 0.0
    %1823 = vmatprep.mubr.f32.mxu0 0.0
    %1824 = vmatmul.mubr.f32.gmra.mrb[0].mxu0 %v1757
    %v1825 = vpop.f32.mrb[0].mxu0
    %v1826 = vadd.f32 0.0, %v1825
    %v1827 = vpop.f32.mrb[0].mxu0
    %1828 = vdwg.mxu0
    %v1830 = vrot.slane %v1826, 6
    %v1832 = vadd.f32 %v1216, %v1830
    %v1833 = vxor.u32 %v1832, 2147483648
    %v1834 = vmul.f32 %v1833, 1.442695
    %v1835 = vpow.pop %v1834
    %v1836 = vadd.f32 %v1835, 1.0
    %v1837 = vrcp.pop %v1836
    %v1838 = vmul.f32 1.0, %v1837
    %v1839 = vadd.f32 %v1826, %v1302
    %v1841 = vrot.slane %v1839, 6
    %1842 = vrot.lane.b32.xlu0 %v1841, 64
    %v1843 = vpop.permute.xlu0 %1842
    %v1845 = vmul.f32 %v1838, %v1843
    %1847 = vrot.lane.b32.xlu0 %v1845, 64
    %v1848 = vpop.permute.xlu0 %1847
    %v1850 = vadd.f32 %v1216, %v1848
    %v1851 = vtanh.pop %v1850
    %v1852 = vsub.f32 1.0, %v1838
    %1854 = vrot.lane.b32.xlu0 %v1851, 96
    %v1855 = vpop.permute.xlu0 %1854
    %v1857 = vmul.f32 %v1852, %v1855
    %v1858 = vrot.slane %v1753, 6
    %v1860 = vmul.f32 %v1838, %v1858
    %v1861 = vadd.f32 %v1857, %v1860
    %v1863 = vrot.slane %v1861, 2
    %1864 = vrot.lane.b32.xlu0 %v1863, 96
    %v1865 = vpop.permute.xlu0 %1864
    %v1866 = vsel %vm163, %v1865, 0
    %1868 = vmatprep.subr.mxu0 0.0
    %1869 = vmatpush1.msra.mxu0 %v1118
    %1870 = vmatprep.subr.mxu0 0.0
    %1871 = vmatpush1.msra.mxu0 %v1119
    %1872 = vmatprep.subr.mxu0 0.0
    %1873 = vmatpush1.msra.mxu0 %v1120
    %1874 = vmatprep.subr.mxu0 0.0
    %1875 = vmatpush1.msra.mxu0 %v1121
    %1876 = vmatprep.subr.mxu0 0.0
    %1877 = vmatpush1.msra.mxu0 0.0
    %1878 = vmatprep.subr.mxu0 0.0
    %1879 = vmatpush1.msra.mxu0 0.0
    %1880 = vmatprep.subr.mxu0 0.0
    %1881 = vmatpush1.msra.mxu0 0.0
    %1882 = vmatprep.subr.mxu0 0.0
    %1883 = vmatpush1.msra.mxu0 0.0
    %1884 = vmatprep.subr.mxu0 0.0
    %1885 = vmatpush1.msra.mxu0 0.0
    %1886 = vmatprep.subr.mxu0 0.0
    %1887 = vmatpush1.msra.mxu0 0.0
    %1888 = vmatprep.subr.mxu0 0.0
    %1889 = vmatpush1.msra.mxu0 0.0
    %1890 = vmatprep.subr.mxu0 0.0
    %1891 = vmatpush1.msra.mxu0 0.0
    %1892 = vmatprep.subr.mxu0 0.0
    %1893 = vmatpush1.msra.mxu0 0.0
    %1894 = vmatprep.subr.mxu0 0.0
    %1895 = vmatpush1.msra.mxu0 0.0
    %1896 = vmatprep.subr.mxu0 0.0
    %1897 = vmatpush1.msra.mxu0 0.0
    %1898 = vmatprep.subr.mxu0 0.0
    %1899 = vmatpush1.msra.mxu0 0.0
    %1900 = vmatprep.subr.mxu0 0.0
    %1901 = vmatpush1.msra.mxu0 0.0
    %1902 = vmatprep.subr.mxu0 0.0
    %1903 = vmatpush1.msra.mxu0 0.0
    %1904 = vmatprep.subr.mxu0 0.0
    %1905 = vmatpush1.msra.mxu0 0.0
    %1906 = vmatprep.subr.mxu0 0.0
    %1907 = vmatpush1.msra.mxu0 0.0
    %1908 = vmatprep.subr.mxu0 0.0
    %1909 = vmatpush1.msra.mxu0 0.0
    %1910 = vmatprep.subr.mxu0 0.0
    %1911 = vmatpush1.msra.mxu0 0.0
    %1912 = vmatprep.subr.mxu0 0.0
    %1913 = vmatpush1.msra.mxu0 0.0
    %1914 = vmatprep.subr.mxu0 0.0
    %1915 = vmatpush1.msra.mxu0 0.0
    %1916 = vmatprep.subr.mxu0 0.0
    %1917 = vmatpush1.msra.mxu0 0.0
    %1918 = vmatprep.subr.mxu0 0.0
    %1919 = vmatpush1.msra.mxu0 0.0
    %1920 = vmatprep.subr.mxu0 0.0
    %1921 = vmatpush1.msra.mxu0 0.0
    %1922 = vmatprep.subr.mxu0 0.0
    %1923 = vmatpush1.msra.mxu0 0.0
    %1924 = vmatprep.subr.mxu0 0.0
    %1925 = vmatpush1.msra.mxu0 0.0
    %1926 = vmatprep.subr.mxu0 0.0
    %1927 = vmatpush1.msra.mxu0 0.0
    %1928 = vmatprep.subr.mxu0 0.0
    %1929 = vmatpush1.msra.mxu0 0.0
    %1930 = vmatprep.subr.mxu0 0.0
    %1931 = vmatpush1.msra.mxu0 0.0
    %1932 = vmatprep.mubr.f32.mxu0 0.0
    %1933 = vmatmul.mubr.f32.gmra.mrb[0].mxu0 %v1866
    %v1934 = vpop.f32.mrb[0].mxu0
    %v1935 = vadd.f32 0.0, %v1934
    %v1936 = vpop.f32.mrb[0].mxu0
    %1937 = vdwg.mxu0
    %v1939 = vrot.slane %v1935, 4
    %v1941 = vadd.f32 %v1216, %v1939
    %v1942 = vxor.u32 %v1941, 2147483648
    %v1943 = vmul.f32 %v1942, 1.442695
    %v1944 = vpow.pop %v1943
    %v1945 = vadd.f32 %v1944, 1.0
    %v1946 = vrcp.pop %v1945
    %v1947 = vmul.f32 1.0, %v1946
    %v1948 = vadd.f32 %v1935, %v1302
    %v1950 = vrot.slane %v1948, 4
    %1951 = vrot.lane.b32.xlu0 %v1950, 64
    %v1952 = vpop.permute.xlu0 %1951
    %v1954 = vmul.f32 %v1947, %v1952
    %1956 = vrot.lane.b32.xlu0 %v1954, 64
    %v1957 = vpop.permute.xlu0 %1956
    %v1959 = vadd.f32 %v1216, %v1957
    %v1960 = vtanh.pop %v1959
    %v1961 = vsub.f32 1.0, %v1947
    %1963 = vrot.lane.b32.xlu0 %v1960, 96
    %v1964 = vpop.permute.xlu0 %1963
    %v1966 = vmul.f32 %v1961, %v1964
    %v1967 = vrot.slane %v1861, 6
    %v1969 = vmul.f32 %v1947, %v1967
    %v1970 = vadd.f32 %v1966, %v1969
    %v1972 = vrot.slane %v1970, 4
    %1973 = vrot.lane.b32.xlu0 %v1972, 96
    %v1974 = vpop.permute.xlu0 %1973
    %v1975 = vsel %vm163, %v1974, 0
    %1977 = vmatprep.subr.mxu0 0.0
    %1978 = vmatpush1.msra.mxu0 %v1118
    %1979 = vmatprep.subr.mxu0 0.0
    %1980 = vmatpush1.msra.mxu0 %v1119
    %1981 = vmatprep.subr.mxu0 0.0
    %1982 = vmatpush1.msra.mxu0 %v1120
    %1983 = vmatprep.subr.mxu0 0.0
    %1984 = vmatpush1.msra.mxu0 %v1121
    %1985 = vmatprep.subr.mxu0 0.0
    %1986 = vmatpush1.msra.mxu0 0.0
    %1987 = vmatprep.subr.mxu0 0.0
    %1988 = vmatpush1.msra.mxu0 0.0
    %1989 = vmatprep.subr.mxu0 0.0
    %1990 = vmatpush1.msra.mxu0 0.0
    %1991 = vmatprep.subr.mxu0 0.0
    %1992 = vmatpush1.msra.mxu0 0.0
    %1993 = vmatprep.subr.mxu0 0.0
    %1994 = vmatpush1.msra.mxu0 0.0
    %1995 = vmatprep.subr.mxu0 0.0
    %1996 = vmatpush1.msra.mxu0 0.0
    %1997 = vmatprep.subr.mxu0 0.0
    %1998 = vmatpush1.msra.mxu0 0.0
    %1999 = vmatprep.subr.mxu0 0.0
    %2000 = vmatpush1.msra.mxu0 0.0
    %2001 = vmatprep.subr.mxu0 0.0
    %2002 = vmatpush1.msra.mxu0 0.0
    %2003 = vmatprep.subr.mxu0 0.0
    %2004 = vmatpush1.msra.mxu0 0.0
    %2005 = vmatprep.subr.mxu0 0.0
    %2006 = vmatpush1.msra.mxu0 0.0
    %2007 = vmatprep.subr.mxu0 0.0
    %2008 = vmatpush1.msra.mxu0 0.0
    %2009 = vmatprep.subr.mxu0 0.0
    %2010 = vmatpush1.msra.mxu0 0.0
    %2011 = vmatprep.subr.mxu0 0.0
    %2012 = vmatpush1.msra.mxu0 0.0
    %2013 = vmatprep.subr.mxu0 0.0
    %2014 = vmatpush1.msra.mxu0 0.0
    %2015 = vmatprep.subr.mxu0 0.0
    %2016 = vmatpush1.msra.mxu0 0.0
    %2017 = vmatprep.subr.mxu0 0.0
    %2018 = vmatpush1.msra.mxu0 0.0
    %2019 = vmatprep.subr.mxu0 0.0
    %2020 = vmatpush1.msra.mxu0 0.0
    %2021 = vmatprep.subr.mxu0 0.0
    %2022 = vmatpush1.msra.mxu0 0.0
    %2023 = vmatprep.subr.mxu0 0.0
    %2024 = vmatpush1.msra.mxu0 0.0
    %2025 = vmatprep.subr.mxu0 0.0
    %2026 = vmatpush1.msra.mxu0 0.0
    %2027 = vmatprep.subr.mxu0 0.0
    %2028 = vmatpush1.msra.mxu0 0.0
    %2029 = vmatprep.subr.mxu0 0.0
    %2030 = vmatpush1.msra.mxu0 0.0
    %2031 = vmatprep.subr.mxu0 0.0
    %2032 = vmatpush1.msra.mxu0 0.0
    %2033 = vmatprep.subr.mxu0 0.0
    %2034 = vmatpush1.msra.mxu0 0.0
    %2035 = vmatprep.subr.mxu0 0.0
    %2036 = vmatpush1.msra.mxu0 0.0
    %2037 = vmatprep.subr.mxu0 0.0
    %2038 = vmatpush1.msra.mxu0 0.0
    %2039 = vmatprep.subr.mxu0 0.0
    %2040 = vmatpush1.msra.mxu0 0.0
    %2041 = vmatprep.mubr.f32.mxu0 0.0
    %2042 = vmatmul.mubr.f32.gmra.mrb[0].mxu0 %v1975
    %v2043 = vpop.f32.mrb[0].mxu0
    %v2044 = vadd.f32 0.0, %v2043
    %v2045 = vpop.f32.mrb[0].mxu0
    %2046 = vdwg.mxu0
    %v2048 = vrot.slane %v2044, 2
    %v2050 = vadd.f32 %v1216, %v2048
    %v2051 = vxor.u32 %v2050, 2147483648
    %v2052 = vmul.f32 %v2051, 1.442695
    %v2053 = vpow.pop %v2052
    %v2054 = vadd.f32 %v2053, 1.0
    %v2055 = vrcp.pop %v2054
    %v2056 = vmul.f32 1.0, %v2055
    %v2057 = vadd.f32 %v2044, %v1302
    %v2059 = vrot.slane %v2057, 2
    %2060 = vrot.lane.b32.xlu0 %v2059, 64
    %v2061 = vpop.permute.xlu0 %2060
    %v2063 = vmul.f32 %v2056, %v2061
    %2065 = vrot.lane.b32.xlu0 %v2063, 64
    %v2066 = vpop.permute.xlu0 %2065
    %v2068 = vadd.f32 %v1216, %v2066
    %v2069 = vtanh.pop %v2068
    %v2070 = vsub.f32 1.0, %v2056
    %2072 = vrot.lane.b32.xlu0 %v2069, 96
    %v2073 = vpop.permute.xlu0 %2072
    %v2075 = vmul.f32 %v2070, %v2073
    %v2076 = vrot.slane %v1970, 6
    %v2078 = vmul.f32 %v2056, %v2076
    %v2079 = vadd.f32 %v2075, %v2078
    %v2080 = vld [vmem:[%s10] sm:$0xff]
    %v2081 = vld [vmem:[%s10 + $0x8] sm:$0xff]
    %v2082 = vld [vmem:[%s10 + $0x10] sm:$0xff]
    %v2083 = vld [vmem:[%s10 + $0x18] sm:$0xff]
    %v2084 = vld [vmem:[%s11] sm:$0x1]
    %v2086 = vlaneseq
    %v2087 = vshrl.u32 %v2086, 7
    %v2088 = vsub.s32 0, %v2087
    %v2089 = vrot.slane %v2084, %v2088
    %v2092 = vrot.slane %v2079, 6
    %2093 = vrot.lane.b32.xlu0 %v2092, 96
    %v2094 = vpop.permute.xlu0 %2093
    %v2095 = vsel %vm163, %v2094, 0
    %2097 = vmatprep.subr.mxu0 0.0
    %2098 = vmatpush1.msra.mxu0 %v2080
    %2099 = vmatprep.subr.mxu0 0.0
    %2100 = vmatpush1.msra.mxu0 %v2081
    %2101 = vmatprep.subr.mxu0 0.0
    %2102 = vmatpush1.msra.mxu0 %v2082
    %2103 = vmatprep.subr.mxu0 0.0
    %2104 = vmatpush1.msra.mxu0 %v2083
    %2105 = vmatprep.subr.mxu0 0.0
    %2106 = vmatpush1.msra.mxu0 0.0
    %2107 = vmatprep.subr.mxu0 0.0
    %2108 = vmatpush1.msra.mxu0 0.0
    %2109 = vmatprep.subr.mxu0 0.0
    %2110 = vmatpush1.msra.mxu0 0.0
    %2111 = vmatprep.subr.mxu0 0.0
    %2112 = vmatpush1.msra.mxu0 0.0
    %2113 = vmatprep.subr.mxu0 0.0
    %2114 = vmatpush1.msra.mxu0 0.0
    %2115 = vmatprep.subr.mxu0 0.0
    %2116 = vmatpush1.msra.mxu0 0.0
    %2117 = vmatprep.subr.mxu0 0.0
    %2118 = vmatpush1.msra.mxu0 0.0
    %2119 = vmatprep.subr.mxu0 0.0
    %2120 = vmatpush1.msra.mxu0 0.0
    %2121 = vmatprep.subr.mxu0 0.0
    %2122 = vmatpush1.msra.mxu0 0.0
    %2123 = vmatprep.subr.mxu0 0.0
    %2124 = vmatpush1.msra.mxu0 0.0
    %2125 = vmatprep.subr.mxu0 0.0
    %2126 = vmatpush1.msra.mxu0 0.0
    %2127 = vmatprep.subr.mxu0 0.0
    %2128 = vmatpush1.msra.mxu0 0.0
    %2129 = vmatprep.subr.mxu0 0.0
    %2130 = vmatpush1.msra.mxu0 0.0
    %2131 = vmatprep.subr.mxu0 0.0
    %2132 = vmatpush1.msra.mxu0 0.0
    %2133 = vmatprep.subr.mxu0 0.0
    %2134 = vmatpush1.msra.mxu0 0.0
    %2135 = vmatprep.subr.mxu0 0.0
    %2136 = vmatpush1.msra.mxu0 0.0
    %2137 = vmatprep.subr.mxu0 0.0
    %2138 = vmatpush1.msra.mxu0 0.0
    %2139 = vmatprep.subr.mxu0 0.0
    %2140 = vmatpush1.msra.mxu0 0.0
    %2141 = vmatprep.subr.mxu0 0.0
    %2142 = vmatpush1.msra.mxu0 0.0
    %2143 = vmatprep.subr.mxu0 0.0
    %2144 = vmatpush1.msra.mxu0 0.0
    %2145 = vmatprep.subr.mxu0 0.0
    %2146 = vmatpush1.msra.mxu0 0.0
    %2147 = vmatprep.subr.mxu0 0.0
    %2148 = vmatpush1.msra.mxu0 0.0
    %2149 = vmatprep.subr.mxu0 0.0
    %2150 = vmatpush1.msra.mxu0 0.0
    %2151 = vmatprep.subr.mxu0 0.0
    %2152 = vmatpush1.msra.mxu0 0.0
    %2153 = vmatprep.subr.mxu0 0.0
    %2154 = vmatpush1.msra.mxu0 0.0
    %2155 = vmatprep.subr.mxu0 0.0
    %2156 = vmatpush1.msra.mxu0 0.0
    %2157 = vmatprep.subr.mxu0 0.0
    %2158 = vmatpush1.msra.mxu0 0.0
    %2159 = vmatprep.subr.mxu0 0.0
    %2160 = vmatpush1.msra.mxu0 0.0
    %2161 = vmatprep.mubr.f32.mxu0 0.0
    %2162 = vmatmul.mubr.f32.gmra.mrb[0].mxu0 %v2095
    %v2163 = vpop.f32.mrb[0].mxu0
    %v2164 = vadd.f32 %v2089, %v2163
    %v2165 = vpop.f32.mrb[0].mxu0
    %2166 = vdwg.mxu0
    %vm2167 = vcmask 25600
    %2168 = vst.msk [vmem:[#allocation2] sm:$0x3] %vm2167, %v2164
    // Predicated region
    $region50: #{tpu_custom_call.1} parent=1 // pred_check
      _
    $region51: #{tpu_custom_call.1} parent=1 // pred_check_branch
      %2170 = sbr.rel (0) target = $region53
    $region52: #{tpu_custom_call.1} parent=1 // pred_region
      %s2172 = ssub.s32 32, 32
      %2173 = vsyncadd [#allocation3], %s2172
      %s2175 = sshll.u32 [#allocation2], 4
      %s2176 = int_to_ptr.vmem [resolvable:$true] %s2175
      %2178 = dma.vmem_to_hbm [thread:$0]  %s2176, 32, %s12, [#allocation3]
    $region53: #{tpu_custom_call.1} parent=1 // pred_fallthru
      _
    // Predicated region
    $region54: #{tpu_custom_call.1} parent=1 // pred_check
      _
    $region55: #{tpu_custom_call.1} parent=1 // pred_check_branch
      %2180 = sbr.rel (0) target = $region57
    $region56: #{tpu_custom_call.1} parent=1 // pred_region
      %2181 = dma.done [#allocation3], 32
    $region57: #{tpu_custom_call.1} parent=1 // pred_fallthru
      _
    %2182 = vsyncpa [#allocation3], 1

</llo_original>
